<compile_context>
chip_gen: v7x
topology: tpu7x:2x2x1
jax: 0.10.0
libtpu: 0.0.40
codegen_flags: <defaults>
</compile_context>

<pallas_src>
import jax
import jax.numpy as jnp
from jax.experimental import pallas as pl
from jax.experimental.pallas import tpu as pltpu

LANE = 128  # TPU lane width


def _round_up(x, m):
    return (x + m - 1) // m * m


def policy_quad_kernel(x_ref, w1_ref, b1_ref, w2_ref, b2_ref, w3_ref, b3_ref,
                       o_ref):
    x = x_ref[...]
    # affine1 -> tanh   (tanh runs on the EUP, matmul on the MXU)
    h1 = jnp.tanh(
        jnp.dot(x, w1_ref[...], preferred_element_type=jnp.float32)
        + b1_ref[...])
    # affine2 -> tanh
    h2 = jnp.tanh(
        jnp.dot(h1, w2_ref[...], preferred_element_type=jnp.float32)
        + b2_ref[...])
    # affine3 (no activation); output block is lane-dense (padded to 128)
    o_ref[...] = (
        jnp.dot(h2, w3_ref[...], preferred_element_type=jnp.float32)
        + b3_ref[...]).astype(o_ref.dtype)


def init_policy_quad_params(key, num_inputs, num_outputs, num_hidden=24):
    """Mirrors Policy_quad.random_initialize:
       weights ~ U(-0.1, 0.1), biases ~ U(0, 1)."""
    ks = jax.random.split(key, 6)

    def w(k, fan_in, fan_out):
        return jax.random.uniform(k, (fan_in, fan_out), jnp.float32,
                                  minval=-0.1, maxval=0.1)

    def b(k, fan_out):
        return jax.random.uniform(k, (1, fan_out), jnp.float32,
                                  minval=0.0, maxval=1.0)

    return {
        "w1": w(ks[0], num_inputs, num_hidden), "b1": b(ks[1], num_hidden),
        "w2": w(ks[2], num_hidden, num_hidden), "b2": b(ks[3], num_hidden),
        "w3": w(ks[4], num_hidden, num_outputs), "b3": b(ks[5], num_outputs),
    }


def pad_policy_quad_params(params, lane=LANE):
    """Zero-pad hidden/output lane dims to a multiple of 128, done once."""
    w1, b1 = params["w1"], params["b1"]
    w2, b2 = params["w2"], params["b2"]
    w3, b3 = params["w3"], params["b3"]
    K, H = w1.shape
    O = w3.shape[1]
    Hp = _round_up(H, lane)
    Op = _round_up(O, lane)

    def pad2(a, rows, cols):
        return jnp.pad(a, ((0, rows - a.shape[0]), (0, cols - a.shape[1])))

    return {
        "w1": pad2(w1, K, Hp), "b1": pad2(b1, 1, Hp),
        "w2": pad2(w2, Hp, Hp), "b2": pad2(b2, 1, Hp),
        "w3": pad2(w3, Hp, Op), "b3": pad2(b3, 1, Op),
    }


def policy_quad_forward(x, pparams, num_outputs, tm=512):
    """x: (B, num_inputs) f32.  pparams: lane-padded params."""
    w1, b1 = pparams["w1"], pparams["b1"]
    w2, b2 = pparams["w2"], pparams["b2"]
    w3, b3 = pparams["w3"], pparams["b3"]
    B, K = x.shape
    Hp = w1.shape[1]
    Op = w3.shape[1]

    # Batch tile: multiple of 8 sublanes, capped at the (rounded-up) batch.
    tm = min(tm, _round_up(B, 8))
    Bp = _round_up(B, tm)
    if Bp != B:
        x = jnp.pad(x, ((0, Bp - B), (0, 0)))
    grid = (Bp // tm,)

    const = lambda shape: pl.BlockSpec(shape, lambda i: (0, 0))

    out_padded = pl.pallas_call(
        policy_quad_kernel,
        out_shape=jax.ShapeDtypeStruct((Bp, Op), jnp.float32),
        grid_spec=pltpu.PrefetchScalarGridSpec(
            num_scalar_prefetch=0,
            grid=grid,
            in_specs=[
                pl.BlockSpec((tm, K), lambda i: (i, 0)),   # x tile
                const((K, Hp)), const((1, Hp)),            # w1, b1
                const((Hp, Hp)), const((1, Hp)),           # w2, b2
                const((Hp, Op)), const((1, Op)),           # w3, b3
            ],
            out_specs=pl.BlockSpec((tm, Op), lambda i: (i, 0)),
        ),
        compiler_params=pltpu.CompilerParams(
            dimension_semantics=("parallel",)),
    )(x, w1, b1, w2, b2, w3, b3)

    # Slice off batch padding and the padded output lanes (lane-dense store
    # in-kernel, cheap slice in XLA).
    return out_padded[:B, :num_outputs]


def policy_quad_ref(x, p):
    h1 = jnp.tanh(x @ p["w1"] + p["b1"])
    h2 = jnp.tanh(h1 @ p["w2"] + p["b2"])
    return h2 @ p["w3"] + p["b3"]


if __name__ == "__main__":
    key = jax.random.PRNGKey(0)
    k_params, k_x = jax.random.split(key)

    # Batched-rollout style shapes: many environment states through the tiny
    # MLP in one pallas_call (16 -> 24 -> 24 -> 4).
    batch, num_inputs, num_hidden, num_outputs = 1024, 16, 24, 4
    params = init_policy_quad_params(k_params, num_inputs, num_outputs,
                                     num_hidden)
    pparams = pad_policy_quad_params(params)   # one-time, outside hot path
    x = jax.random.normal(k_x, (batch, num_inputs), jnp.float32)

    out = policy_quad_forward(x, pparams, num_outputs, tm=512)
    out = jax.block_until_ready(out)

    ref = policy_quad_ref(x, params)
    assert out.shape == (batch, num_outputs)
    assert jnp.allclose(out, ref, atol=1e-5, rtol=1e-5)

    print("KERNEL_OK")
</pallas_src>

<mosaic_0001>
module attributes {stable_mosaic.version = 11 : i64} {
  func.func @policy_quad_kernel(%arg0: i32, %arg1: memref<512x16xf32, #tpu.memory_space<vmem>>, %arg2: memref<16x128xf32, #tpu.memory_space<vmem>>, %arg3: memref<1x128xf32, #tpu.memory_space<vmem>>, %arg4: memref<128x128xf32, #tpu.memory_space<vmem>>, %arg5: memref<1x128xf32, #tpu.memory_space<vmem>>, %arg6: memref<128x128xf32, #tpu.memory_space<vmem>>, %arg7: memref<1x128xf32, #tpu.memory_space<vmem>>, %arg8: memref<512x128xf32, #tpu.memory_space<vmem>>) attributes {dimension_semantics = [#tpu.dimension_semantics<parallel>], iteration_bounds = array<i64: 2>, scalar_prefetch = 0 : i64, scratch_operands = 0 : i64, tpu.core_type = #tpu.core_type<tc>, window_params = [{transform_indices = @transform_0, window_bounds = array<i64: 512, 16>}, {pipeline_mode = #tpu.pipeline_mode<synchronous>, transform_indices = @transform_1, window_bounds = array<i64: 16, 128>}, {pipeline_mode = #tpu.pipeline_mode<synchronous>, transform_indices = @transform_2, window_bounds = array<i64: 1, 128>}, {pipeline_mode = #tpu.pipeline_mode<synchronous>, transform_indices = @transform_3, window_bounds = array<i64: 128, 128>}, {pipeline_mode = #tpu.pipeline_mode<synchronous>, transform_indices = @transform_4, window_bounds = array<i64: 1, 128>}, {pipeline_mode = #tpu.pipeline_mode<synchronous>, transform_indices = @transform_5, window_bounds = array<i64: 128, 128>}, {pipeline_mode = #tpu.pipeline_mode<synchronous>, transform_indices = @transform_6, window_bounds = array<i64: 1, 128>}, {transform_indices = @transform_7, window_bounds = array<i64: 512, 128>}]} {
    %c0 = arith.constant 0 : index
    %c0_0 = arith.constant 0 : index
    %0 = vector.load %arg1[%c0, %c0_0] : memref<512x16xf32, #tpu.memory_space<vmem>>, vector<512x16xf32>
    %c0_1 = arith.constant 0 : index
    %c0_2 = arith.constant 0 : index
    %1 = vector.load %arg2[%c0_1, %c0_2] : memref<16x128xf32, #tpu.memory_space<vmem>>, vector<16x128xf32>
    %cst = arith.constant dense<0.000000e+00> : vector<512x128xf32>
    %2 = tpu.matmul %0, %1, %cst {dimension_numbers = #tpu.dot_dimension_numbers<[1], [0], [0], [1], [0, 0, 1, 1], [], []>} : vector<512x16xf32>, vector<16x128xf32>, vector<512x128xf32> -> vector<512x128xf32>
    %c0_3 = arith.constant 0 : index
    %c0_4 = arith.constant 0 : index
    %3 = vector.load %arg3[%c0_3, %c0_4] : memref<1x128xf32, #tpu.memory_space<vmem>>, vector<1x128xf32>
    %4 = vector.broadcast %3 : vector<1x128xf32> to vector<512x128xf32>
    %5 = arith.addf %2, %4 : vector<512x128xf32>
    %6 = math.tanh %5 : vector<512x128xf32>
    %c0_5 = arith.constant 0 : index
    %c0_6 = arith.constant 0 : index
    %7 = vector.load %arg4[%c0_5, %c0_6] : memref<128x128xf32, #tpu.memory_space<vmem>>, vector<128x128xf32>
    %cst_7 = arith.constant dense<0.000000e+00> : vector<512x128xf32>
    %8 = tpu.matmul %6, %7, %cst_7 {dimension_numbers = #tpu.dot_dimension_numbers<[1], [0], [0], [1], [0, 0, 1, 1], [], []>} : vector<512x128xf32>, vector<128x128xf32>, vector<512x128xf32> -> vector<512x128xf32>
    %c0_8 = arith.constant 0 : index
    %c0_9 = arith.constant 0 : index
    %9 = vector.load %arg5[%c0_8, %c0_9] : memref<1x128xf32, #tpu.memory_space<vmem>>, vector<1x128xf32>
    %10 = vector.broadcast %9 : vector<1x128xf32> to vector<512x128xf32>
    %11 = arith.addf %8, %10 : vector<512x128xf32>
    %12 = math.tanh %11 : vector<512x128xf32>
    %c0_10 = arith.constant 0 : index
    %c0_11 = arith.constant 0 : index
    %13 = vector.load %arg6[%c0_10, %c0_11] : memref<128x128xf32, #tpu.memory_space<vmem>>, vector<128x128xf32>
    %cst_12 = arith.constant dense<0.000000e+00> : vector<512x128xf32>
    %14 = tpu.matmul %12, %13, %cst_12 {dimension_numbers = #tpu.dot_dimension_numbers<[1], [0], [0], [1], [0, 0, 1, 1], [], []>} : vector<512x128xf32>, vector<128x128xf32>, vector<512x128xf32> -> vector<512x128xf32>
    %c0_13 = arith.constant 0 : index
    %c0_14 = arith.constant 0 : index
    %15 = vector.load %arg7[%c0_13, %c0_14] : memref<1x128xf32, #tpu.memory_space<vmem>>, vector<1x128xf32>
    %16 = vector.broadcast %15 : vector<1x128xf32> to vector<512x128xf32>
    %17 = arith.addf %14, %16 : vector<512x128xf32>
    %c0_15 = arith.constant 0 : index
    %c0_16 = arith.constant 0 : index
    %18 = vector.load %arg8[%c0_15, %c0_16] : memref<512x128xf32, #tpu.memory_space<vmem>>, vector<512x128xf32>
    tpu.vector_store %arg8[%c0_15, %c0_16], %17 {strides = array<i32>} : memref<512x128xf32, #tpu.memory_space<vmem>>, vector<512x128xf32>,
    return
  }
  func.func @transform_0(%arg0: i32) -> (i32, i32) {
    %c0_i32 = arith.constant 0 : i32
    %c0_i32_0 = arith.constant 0 : i32
    return %arg0, %c0_i32 : i32, i32
  }
  func.func @transform_1(%arg0: i32) -> (i32, i32) {
    %c0_i32 = arith.constant 0 : i32
    %c0_i32_0 = arith.constant 0 : i32
    %c0_i32_1 = arith.constant 0 : i32
    return %c0_i32, %c0_i32_0 : i32, i32
  }
  func.func @transform_2(%arg0: i32) -> (i32, i32) {
    %c0_i32 = arith.constant 0 : i32
    %c0_i32_0 = arith.constant 0 : i32
    %c0_i32_1 = arith.constant 0 : i32
    return %c0_i32, %c0_i32_0 : i32, i32
  }
  func.func @transform_3(%arg0: i32) -> (i32, i32) {
    %c0_i32 = arith.constant 0 : i32
    %c0_i32_0 = arith.constant 0 : i32
    %c0_i32_1 = arith.constant 0 : i32
    return %c0_i32, %c0_i32_0 : i32, i32
  }
  func.func @transform_4(%arg0: i32) -> (i32, i32) {
    %c0_i32 = arith.constant 0 : i32
    %c0_i32_0 = arith.constant 0 : i32
    %c0_i32_1 = arith.constant 0 : i32
    return %c0_i32, %c0_i32_0 : i32, i32
  }
  func.func @transform_5(%arg0: i32) -> (i32, i32) {
    %c0_i32 = arith.constant 0 : i32
    %c0_i32_0 = arith.constant 0 : i32
    %c0_i32_1 = arith.constant 0 : i32
    return %c0_i32, %c0_i32_0 : i32, i32
  }
  func.func @transform_6(%arg0: i32) -> (i32, i32) {
    %c0_i32 = arith.constant 0 : i32
    %c0_i32_0 = arith.constant 0 : i32
    %c0_i32_1 = arith.constant 0 : i32
    return %c0_i32, %c0_i32_0 : i32, i32
  }
  func.func @transform_7(%arg0: i32) -> (i32, i32) {
    %c0_i32 = arith.constant 0 : i32
    %c0_i32_0 = arith.constant 0 : i32
    return %arg0, %c0_i32 : i32, i32
  }
}

</mosaic_0001>

<llo_original>
// kernel: tpu_custom_call.1
$region0: #{tpu_custom_call.1}
  #allocation0 [shape = 'u32[]', space=smem, size = 0x4, offset = 0x4, fixed_abs, tag = 'smem constant byte address 0x4 - core index']
  #allocation1 [shape = 'u32[144,128]{1,0:T(1,128)}', space=vmem, size = 0x12000, scoped, tag = 'internal scratch']
  %s0 = inlined_call_operand.vmem [shape: f32[1024,16], index: 0, kind: input, shape index: {}]
  %s1 = inlined_call_operand.vmem [shape: f32[16,128], index: 1, kind: input, shape index: {}]
  %s2 = inlined_call_operand.vmem [shape: f32[1,128], index: 2, kind: input, shape index: {}]
  %s3 = inlined_call_operand.vmem [shape: f32[128,128], index: 3, kind: input, shape index: {}]
  %s4 = inlined_call_operand.vmem [shape: f32[1,128], index: 4, kind: input, shape index: {}]
  %s5 = inlined_call_operand.vmem [shape: f32[128,128], index: 5, kind: input, shape index: {}]
  %s6 = inlined_call_operand.vmem [shape: f32[1,128], index: 6, kind: input, shape index: {}]
  %s7 = inlined_call_operand.hbm [shape: f32[1024,128], index: 7, kind: output, shape index: {}]
  %s8 = sld [smem:[#allocation0]]
  $region61: #{tpu_custom_call.1} parent=0
    _
  %s10 = ssub.s32 1, %s8
  %s11 = scalar_select 0, %s10, %s8
  $region1: #{tpu_custom_call.1} parent=0
    #allocation2 [shape = 'u8[524288]{0}', space=vmem, size = 0x80000, scoped, tag = 'output window, operand 0']
    #allocation3 [shape = 's32[2]{0}', space=sflag, size = 0x8, scoped, tag = 'scoped memory for tpu_custom_call.1']
    %12 = vsyncpa [#allocation3], 0
    %s13 = scalar_lea.sflag [#allocation3], 1
    %14 = vsyncpa %s13, 0
    loop: start=0, step=1, limit=4
    $region2: #{tpu_custom_call.1} parent=1 // loop_pre_header
      _
    $region3: #{tpu_custom_call.1} parent=1 // loop_header
      %s16 = sphi 0, %s20
      %p17 = scmp.ge.s32.totalorder %s16, 4
      %s26 = sphi 0, %s28
      %s29 = sphi 0, %s26
      %s30 = sphi 0, %s29
      %s46 = sphi 0, %s30
      %s50 = sphi 0, %s50
      %s52 = sphi 0, %s50
      %s53 = sphi 0, %s52
      %s67 = sphi 0, %s53
      %s71 = sphi 0, %s71
      %s73 = sphi 0, %s71
      %s74 = sphi 0, %s73
      %s88 = sphi 0, %s74
      %s92 = sphi 0, %s92
      %s94 = sphi 0, %s92
      %s95 = sphi 0, %s94
      %s109 = sphi 0, %s95
      %s113 = sphi 0, %s113
      %s115 = sphi 0, %s113
      %s116 = sphi 0, %s115
      %s130 = sphi 0, %s116
      %s134 = sphi 0, %s134
      %s136 = sphi 0, %s134
      %s137 = sphi 0, %s136
      %s151 = sphi 0, %s137
      %s155 = sphi 0, %s155
      %s157 = sphi 0, %s155
      %s158 = sphi 0, %s157
      %s172 = sphi 0, %s158
      %s178 = sphi 0, %s180
      %s181 = sphi 0, %s178
      %s182 = sphi 0, %s181
      %s198 = sphi 0, %s182
    $region4: #{tpu_custom_call.1} parent=1 // loop_header_branch
      %19 = sbr.rel (%p17) target = $region8
    $region5: #{tpu_custom_call.1} parent=1 // loop_body
      %s21 = ssub.s32 %s16, 1
      %s22 = ssub.s32 %s16, 2
      %s23 = sadd.s32 %s16, 1
      %s24 = ssub.s32 %s16, %s23
      %p25 = scmp.eq.s32.totalorder %s24, 0
      %s27 = sadd.s32 %s26, 1
      %s28 = scalar_select %p25, %s26, %s27
      %p31 = pneg %p25
      %p32 = scmp.eq.s32.totalorder %s16, 1
      %p33 = por %p31, %p32
      %p34 = scmp.ne.s32.totalorder %s26, %s29
      %p35 = scmp.eq.s32.totalorder %s16, 0
      %p36 = por %p34, %p35
      %p37 = scmp.ne.s32.totalorder %s26, %s29
      %p38 = scmp.eq.s32.totalorder %s21, 1
      %p39 = por %p37, %p38
      %p40 = scmp.ne.s32.totalorder %s29, %s30
      %p41 = scmp.eq.s32.totalorder %s21, 0
      %p42 = por %p40, %p41
      %p43 = scmp.ne.s32.totalorder %s29, %s30
      %p44 = scmp.eq.s32.totalorder %s22, 1
      %p45 = por %p43, %p44
      %p47 = scmp.ne.s32.totalorder %s30, %s46
      %p48 = scmp.eq.s32.totalorder %s22, 0
      %p49 = por %p47, %p48
      %s51 = sadd.s32 %s50, 1
      %p54 = scmp.eq.s32.totalorder %s16, 1
      %p55 = scmp.ne.s32.totalorder %s50, %s52
      %p56 = scmp.eq.s32.totalorder %s16, 0
      %p57 = por %p55, %p56
      %p58 = scmp.ne.s32.totalorder %s50, %s52
      %p59 = scmp.eq.s32.totalorder %s21, 1
      %p60 = por %p58, %p59
      %p61 = scmp.ne.s32.totalorder %s52, %s53
      %p62 = scmp.eq.s32.totalorder %s21, 0
      %p63 = por %p61, %p62
      %p64 = scmp.ne.s32.totalorder %s52, %s53
      %p65 = scmp.eq.s32.totalorder %s22, 1
      %p66 = por %p64, %p65
      %p68 = scmp.ne.s32.totalorder %s53, %s67
      %p69 = scmp.eq.s32.totalorder %s22, 0
      %p70 = por %p68, %p69
      %s72 = sadd.s32 %s71, 1
      %p75 = scmp.eq.s32.totalorder %s16, 1
      %p76 = scmp.ne.s32.totalorder %s71, %s73
      %p77 = scmp.eq.s32.totalorder %s16, 0
      %p78 = por %p76, %p77
      %p79 = scmp.ne.s32.totalorder %s71, %s73
      %p80 = scmp.eq.s32.totalorder %s21, 1
      %p81 = por %p79, %p80
      %p82 = scmp.ne.s32.totalorder %s73, %s74
      %p83 = scmp.eq.s32.totalorder %s21, 0
      %p84 = por %p82, %p83
      %p85 = scmp.ne.s32.totalorder %s73, %s74
      %p86 = scmp.eq.s32.totalorder %s22, 1
      %p87 = por %p85, %p86
      %p89 = scmp.ne.s32.totalorder %s74, %s88
      %p90 = scmp.eq.s32.totalorder %s22, 0
      %p91 = por %p89, %p90
      %s93 = sadd.s32 %s92, 1
      %p96 = scmp.eq.s32.totalorder %s16, 1
      %p97 = scmp.ne.s32.totalorder %s92, %s94
      %p98 = scmp.eq.s32.totalorder %s16, 0
      %p99 = por %p97, %p98
      %p100 = scmp.ne.s32.totalorder %s92, %s94
      %p101 = scmp.eq.s32.totalorder %s21, 1
      %p102 = por %p100, %p101
      %p103 = scmp.ne.s32.totalorder %s94, %s95
      %p104 = scmp.eq.s32.totalorder %s21, 0
      %p105 = por %p103, %p104
      %p106 = scmp.ne.s32.totalorder %s94, %s95
      %p107 = scmp.eq.s32.totalorder %s22, 1
      %p108 = por %p106, %p107
      %p110 = scmp.ne.s32.totalorder %s95, %s109
      %p111 = scmp.eq.s32.totalorder %s22, 0
      %p112 = por %p110, %p111
      %s114 = sadd.s32 %s113, 1
      %p117 = scmp.eq.s32.totalorder %s16, 1
      %p118 = scmp.ne.s32.totalorder %s113, %s115
      %p119 = scmp.eq.s32.totalorder %s16, 0
      %p120 = por %p118, %p119
      %p121 = scmp.ne.s32.totalorder %s113, %s115
      %p122 = scmp.eq.s32.totalorder %s21, 1
      %p123 = por %p121, %p122
      %p124 = scmp.ne.s32.totalorder %s115, %s116
      %p125 = scmp.eq.s32.totalorder %s21, 0
      %p126 = por %p124, %p125
      %p127 = scmp.ne.s32.totalorder %s115, %s116
      %p128 = scmp.eq.s32.totalorder %s22, 1
      %p129 = por %p127, %p128
      %p131 = scmp.ne.s32.totalorder %s116, %s130
      %p132 = scmp.eq.s32.totalorder %s22, 0
      %p133 = por %p131, %p132
      %s135 = sadd.s32 %s134, 1
      %p138 = scmp.eq.s32.totalorder %s16, 1
      %p139 = scmp.ne.s32.totalorder %s134, %s136
      %p140 = scmp.eq.s32.totalorder %s16, 0
      %p141 = por %p139, %p140
      %p142 = scmp.ne.s32.totalorder %s134, %s136
      %p143 = scmp.eq.s32.totalorder %s21, 1
      %p144 = por %p142, %p143
      %p145 = scmp.ne.s32.totalorder %s136, %s137
      %p146 = scmp.eq.s32.totalorder %s21, 0
      %p147 = por %p145, %p146
      %p148 = scmp.ne.s32.totalorder %s136, %s137
      %p149 = scmp.eq.s32.totalorder %s22, 1
      %p150 = por %p148, %p149
      %p152 = scmp.ne.s32.totalorder %s137, %s151
      %p153 = scmp.eq.s32.totalorder %s22, 0
      %p154 = por %p152, %p153
      %s156 = sadd.s32 %s155, 1
      %p159 = scmp.eq.s32.totalorder %s16, 1
      %p160 = scmp.ne.s32.totalorder %s155, %s157
      %p161 = scmp.eq.s32.totalorder %s16, 0
      %p162 = por %p160, %p161
      %p163 = scmp.ne.s32.totalorder %s155, %s157
      %p164 = scmp.eq.s32.totalorder %s21, 1
      %p165 = por %p163, %p164
      %p166 = scmp.ne.s32.totalorder %s157, %s158
      %p167 = scmp.eq.s32.totalorder %s21, 0
      %p168 = por %p166, %p167
      %p169 = scmp.ne.s32.totalorder %s157, %s158
      %p170 = scmp.eq.s32.totalorder %s22, 1
      %p171 = por %p169, %p170
      %p173 = scmp.ne.s32.totalorder %s158, %s172
      %p174 = scmp.eq.s32.totalorder %s22, 0
      %p175 = por %p173, %p174
      %s176 = ssub.s32 %s16, %s23
      %p177 = scmp.eq.s32.totalorder %s176, 0
      %s179 = sadd.s32 %s178, 1
      %s180 = scalar_select %p177, %s178, %s179
      %p183 = pneg %p177
      %p184 = scmp.eq.s32.totalorder %s16, 1
      %p185 = por %p183, %p184
      %p186 = scmp.ne.s32.totalorder %s178, %s181
      %p187 = scmp.eq.s32.totalorder %s16, 0
      %p188 = por %p186, %p187
      %p189 = scmp.ne.s32.totalorder %s178, %s181
      %p190 = scmp.eq.s32.totalorder %s21, 1
      %p191 = por %p189, %p190
      %p192 = scmp.ne.s32.totalorder %s181, %s182
      %p193 = scmp.eq.s32.totalorder %s21, 0
      %p194 = por %p192, %p193
      %p195 = scmp.ne.s32.totalorder %s181, %s182
      %p196 = scmp.eq.s32.totalorder %s22, 1
      %p197 = por %p195, %p196
      %p199 = scmp.ne.s32.totalorder %s182, %s198
      %p200 = scmp.eq.s32.totalorder %s22, 0
      %p201 = por %p199, %p200
      %p202 = scmp.le.s32.totalorder 1, %s16
      %p203 = scmp.lt.s32.totalorder %s16, 3
      %p204 = pnand %p202, %p203
      %p205 = pneg %p204
      // Predicated region
      $region9: #{tpu_custom_call.1} parent=5 // pred_check
        _
      $region10: #{tpu_custom_call.1} parent=5 // pred_check_branch
        %207 = sbr.rel (%p204) target = $region12
      $region11: #{tpu_custom_call.1} parent=5 // pred_region
        %s208 = ssub.s32 %s16, 1
        // Predicated region
        $region13: #{tpu_custom_call.1} parent=11 // pred_check
          %p209 = pneg %p63
        $region14: #{tpu_custom_call.1} parent=11 // pred_check_branch
          %211 = sbr.rel (%p209) target = $region16
        $region15: #{tpu_custom_call.1} parent=11 // pred_region
          _
        $region16: #{tpu_custom_call.1} parent=11 // pred_fallthru
          _
        // Predicated region
        $region17: #{tpu_custom_call.1} parent=11 // pred_check
          %p212 = pneg %p84
        $region18: #{tpu_custom_call.1} parent=11 // pred_check_branch
          %214 = sbr.rel (%p212) target = $region20
        $region19: #{tpu_custom_call.1} parent=11 // pred_region
          _
        $region20: #{tpu_custom_call.1} parent=11 // pred_fallthru
          _
        // Predicated region
        $region21: #{tpu_custom_call.1} parent=11 // pred_check
          %p215 = pneg %p105
        $region22: #{tpu_custom_call.1} parent=11 // pred_check_branch
          %217 = sbr.rel (%p215) target = $region24
        $region23: #{tpu_custom_call.1} parent=11 // pred_region
          _
        $region24: #{tpu_custom_call.1} parent=11 // pred_fallthru
          _
        // Predicated region
        $region25: #{tpu_custom_call.1} parent=11 // pred_check
          %p218 = pneg %p126
        $region26: #{tpu_custom_call.1} parent=11 // pred_check_branch
          %220 = sbr.rel (%p218) target = $region28
        $region27: #{tpu_custom_call.1} parent=11 // pred_region
          _
        $region28: #{tpu_custom_call.1} parent=11 // pred_fallthru
          _
        // Predicated region
        $region29: #{tpu_custom_call.1} parent=11 // pred_check
          %p221 = pneg %p147
        $region30: #{tpu_custom_call.1} parent=11 // pred_check_branch
          %223 = sbr.rel (%p221) target = $region32
        $region31: #{tpu_custom_call.1} parent=11 // pred_region
          _
        $region32: #{tpu_custom_call.1} parent=11 // pred_fallthru
          _
        // Predicated region
        $region33: #{tpu_custom_call.1} parent=11 // pred_check
          %p224 = pneg %p168
        $region34: #{tpu_custom_call.1} parent=11 // pred_check_branch
          %226 = sbr.rel (%p224) target = $region36
        $region35: #{tpu_custom_call.1} parent=11 // pred_region
          _
        $region36: #{tpu_custom_call.1} parent=11 // pred_fallthru
          _
      $region12: #{tpu_custom_call.1} parent=5 // pred_fallthru
        _
      %p227 = scmp.lt.s32.totalorder %s16, 2
      // Predicated region
      $region37: #{tpu_custom_call.1} parent=5 // pred_check
        %p228 = pneg %p227
      $region38: #{tpu_custom_call.1} parent=5 // pred_check_branch
        %230 = sbr.rel (%p228) target = $region40
      $region39: #{tpu_custom_call.1} parent=5 // pred_region
        // Predicated region
        $region41: #{tpu_custom_call.1} parent=39 // pred_check
          %p231 = pneg %p36
        $region42: #{tpu_custom_call.1} parent=39 // pred_check_branch
          %233 = sbr.rel (%p231) target = $region44
        $region43: #{tpu_custom_call.1} parent=39 // pred_region
          %s234 = smul.u32 64, %s16
          %p235 = scmp.lt.s32.totalorder %s234, 127
          %s236 = scalar_select %p235, %s234, 127
          %s237 = smul.addr %s236, 8
          %s238 = scalar_lea.vmem %s0, %s237
          %s239 = smul.u32 64, %s16
        $region44: #{tpu_custom_call.1} parent=39 // pred_fallthru
          _
      $region40: #{tpu_custom_call.1} parent=5 // pred_fallthru
        _
      %p240 = scmp.le.s32.totalorder 1, %s16
      %p241 = scmp.lt.s32.totalorder %s16, 3
      %p242 = pnand %p240, %p241
      %p243 = pneg %p242
      // Predicated region
      $region45: #{tpu_custom_call.1} parent=5 // pred_check
        _
      $region46: #{tpu_custom_call.1} parent=5 // pred_check_branch
        %245 = sbr.rel (%p242) target = $region48
      $region47: #{tpu_custom_call.1} parent=5 // pred_region
        %s246 = ssub.s32 %s16, 1
        %s247 = smul.u32 64, %s21
        %p248 = scmp.lt.s32.totalorder %s247, 127
        %s249 = scalar_select %p248, %s247, 127
        %s250 = smul.addr %s249, 8
        %s251 = scalar_lea.vmem %s0, %s250
        %p252 = pneg %p42
        %p253 = pneg %p39
        %p254 = pneg %p63
        %p255 = pneg %p60
        %p256 = pneg %p84
        %p257 = pneg %p81
        %p258 = pneg %p105
        %p259 = pneg %p102
        %p260 = pneg %p126
        %p261 = pneg %p123
        %p262 = pneg %p147
        %p263 = pneg %p144
        %p264 = pneg %p168
        %p265 = pneg %p165
        %p266 = pneg %p194
        %p267 = pneg %p191
        %s268 = sand.u32 %s181, 1
        %s269 = scalar_lea.sflag [#allocation3], %s268
        %s270 = sand.u32 %s181, 1
        %s271 = smul.addr %s270, 512
        %s272 = scalar_lea.vmem [#allocation2], %s271
        %s273 = smul.u32 64, %s21
        %p274 = scmp.lt.s32.totalorder %s273, 127
        %s275 = scalar_select %p274, %s273, 127
        %s276 = smul.addr %s275, 8
        %s277 = scalar_lea.vmem %s0, %s276
        %s278 = smul.u32 64, %s21
        %s279 = smul.u32 64, %s21
        %v280 = vld [vmem:[%s277] sm:$0xff]
        %v281 = vld [vmem:[%s277 + $0x8] sm:$0xff]
        %v282 = vld [vmem:[%s277 + $0x10] sm:$0xff]
        %v283 = vld [vmem:[%s277 + $0x18] sm:$0xff]
        %v284 = vld [vmem:[%s277 + $0x20] sm:$0xff]
        %v285 = vld [vmem:[%s277 + $0x28] sm:$0xff]
        %v286 = vld [vmem:[%s277 + $0x30] sm:$0xff]
        %v287 = vld [vmem:[%s277 + $0x38] sm:$0xff]
        %v288 = vld [vmem:[%s277 + $0x40] sm:$0xff]
        %v289 = vld [vmem:[%s277 + $0x48] sm:$0xff]
        %v290 = vld [vmem:[%s277 + $0x50] sm:$0xff]
        %v291 = vld [vmem:[%s277 + $0x58] sm:$0xff]
        %v292 = vld [vmem:[%s277 + $0x60] sm:$0xff]
        %v293 = vld [vmem:[%s277 + $0x68] sm:$0xff]
        %v294 = vld [vmem:[%s277 + $0x70] sm:$0xff]
        %v295 = vld [vmem:[%s277 + $0x78] sm:$0xff]
        %v296 = vld [vmem:[%s277 + $0x80] sm:$0xff]
        %v297 = vld [vmem:[%s277 + $0x88] sm:$0xff]
        %v298 = vld [vmem:[%s277 + $0x90] sm:$0xff]
        %v299 = vld [vmem:[%s277 + $0x98] sm:$0xff]
        %v300 = vld [vmem:[%s277 + $0xa0] sm:$0xff]
        %v301 = vld [vmem:[%s277 + $0xa8] sm:$0xff]
        %v302 = vld [vmem:[%s277 + $0xb0] sm:$0xff]
        %v303 = vld [vmem:[%s277 + $0xb8] sm:$0xff]
        %v304 = vld [vmem:[%s277 + $0xc0] sm:$0xff]
        %v305 = vld [vmem:[%s277 + $0xc8] sm:$0xff]
        %v306 = vld [vmem:[%s277 + $0xd0] sm:$0xff]
        %v307 = vld [vmem:[%s277 + $0xd8] sm:$0xff]
        %v308 = vld [vmem:[%s277 + $0xe0] sm:$0xff]
        %v309 = vld [vmem:[%s277 + $0xe8] sm:$0xff]
        %v310 = vld [vmem:[%s277 + $0xf0] sm:$0xff]
        %v311 = vld [vmem:[%s277 + $0xf8] sm:$0xff]
        %v312 = vld [vmem:[%s277 + $0x100] sm:$0xff]
        %v313 = vld [vmem:[%s277 + $0x108] sm:$0xff]
        %v314 = vld [vmem:[%s277 + $0x110] sm:$0xff]
        %v315 = vld [vmem:[%s277 + $0x118] sm:$0xff]
        %v316 = vld [vmem:[%s277 + $0x120] sm:$0xff]
        %v317 = vld [vmem:[%s277 + $0x128] sm:$0xff]
        %v318 = vld [vmem:[%s277 + $0x130] sm:$0xff]
        %v319 = vld [vmem:[%s277 + $0x138] sm:$0xff]
        %v320 = vld [vmem:[%s277 + $0x140] sm:$0xff]
        %v321 = vld [vmem:[%s277 + $0x148] sm:$0xff]
        %v322 = vld [vmem:[%s277 + $0x150] sm:$0xff]
        %v323 = vld [vmem:[%s277 + $0x158] sm:$0xff]
        %v324 = vld [vmem:[%s277 + $0x160] sm:$0xff]
        %v325 = vld [vmem:[%s277 + $0x168] sm:$0xff]
        %v326 = vld [vmem:[%s277 + $0x170] sm:$0xff]
        %v327 = vld [vmem:[%s277 + $0x178] sm:$0xff]
        %v328 = vld [vmem:[%s277 + $0x180] sm:$0xff]
        %v329 = vld [vmem:[%s277 + $0x188] sm:$0xff]
        %v330 = vld [vmem:[%s277 + $0x190] sm:$0xff]
        %v331 = vld [vmem:[%s277 + $0x198] sm:$0xff]
        %v332 = vld [vmem:[%s277 + $0x1a0] sm:$0xff]
        %v333 = vld [vmem:[%s277 + $0x1a8] sm:$0xff]
        %v334 = vld [vmem:[%s277 + $0x1b0] sm:$0xff]
        %v335 = vld [vmem:[%s277 + $0x1b8] sm:$0xff]
        %v336 = vld [vmem:[%s277 + $0x1c0] sm:$0xff]
        %v337 = vld [vmem:[%s277 + $0x1c8] sm:$0xff]
        %v338 = vld [vmem:[%s277 + $0x1d0] sm:$0xff]
        %v339 = vld [vmem:[%s277 + $0x1d8] sm:$0xff]
        %v340 = vld [vmem:[%s277 + $0x1e0] sm:$0xff]
        %v341 = vld [vmem:[%s277 + $0x1e8] sm:$0xff]
        %v342 = vld [vmem:[%s277 + $0x1f0] sm:$0xff]
        %v343 = vld [vmem:[%s277 + $0x1f8] sm:$0xff]
        %v344 = vld [vmem:[%s1] sm:$0xff]
        %v345 = vld [vmem:[%s1 + $0x8] sm:$0xff]
        %v346 = vld [vmem:[%s2] sm:$0x1]
        %v348 = vlaneseq
        %v349 = vshrl.u32 %v348, 7
        %v350 = vsub.s32 0, %v349
        %v351 = vrot.slane %v346, %v350
        %vm353 = vcmask 130048
        %v355 = vsel %vm353, %v280, 0
        %v358 = vsel %vm353, %v281, 0
        %v361 = vsel %vm353, %v282, 0
        %v364 = vsel %vm353, %v283, 0
        %v367 = vsel %vm353, %v284, 0
        %v370 = vsel %vm353, %v285, 0
        %v373 = vsel %vm353, %v286, 0
        %v376 = vsel %vm353, %v287, 0
        %v379 = vsel %vm353, %v288, 0
        %v382 = vsel %vm353, %v289, 0
        %v385 = vsel %vm353, %v290, 0
        %v388 = vsel %vm353, %v291, 0
        %v391 = vsel %vm353, %v292, 0
        %v394 = vsel %vm353, %v293, 0
        %v397 = vsel %vm353, %v294, 0
        %v400 = vsel %vm353, %v295, 0
        %v403 = vsel %vm353, %v296, 0
        %v406 = vsel %vm353, %v297, 0
        %v409 = vsel %vm353, %v298, 0
        %v412 = vsel %vm353, %v299, 0
        %v415 = vsel %vm353, %v300, 0
        %v418 = vsel %vm353, %v301, 0
        %v421 = vsel %vm353, %v302, 0
        %v424 = vsel %vm353, %v303, 0
        %v427 = vsel %vm353, %v304, 0
        %v430 = vsel %vm353, %v305, 0
        %v433 = vsel %vm353, %v306, 0
        %v436 = vsel %vm353, %v307, 0
        %v439 = vsel %vm353, %v308, 0
        %v442 = vsel %vm353, %v309, 0
        %v445 = vsel %vm353, %v310, 0
        %v448 = vsel %vm353, %v311, 0
        %v451 = vsel %vm353, %v312, 0
        %v454 = vsel %vm353, %v313, 0
        %v457 = vsel %vm353, %v314, 0
        %v460 = vsel %vm353, %v315, 0
        %v463 = vsel %vm353, %v316, 0
        %v466 = vsel %vm353, %v317, 0
        %v469 = vsel %vm353, %v318, 0
        %v472 = vsel %vm353, %v319, 0
        %v475 = vsel %vm353, %v320, 0
        %v478 = vsel %vm353, %v321, 0
        %v481 = vsel %vm353, %v322, 0
        %v484 = vsel %vm353, %v323, 0
        %v487 = vsel %vm353, %v324, 0
        %v490 = vsel %vm353, %v325, 0
        %v493 = vsel %vm353, %v326, 0
        %v496 = vsel %vm353, %v327, 0
        %v499 = vsel %vm353, %v328, 0
        %v502 = vsel %vm353, %v329, 0
        %v505 = vsel %vm353, %v330, 0
        %v508 = vsel %vm353, %v331, 0
        %v511 = vsel %vm353, %v332, 0
        %v514 = vsel %vm353, %v333, 0
        %v517 = vsel %vm353, %v334, 0
        %v520 = vsel %vm353, %v335, 0
        %v523 = vsel %vm353, %v336, 0
        %v526 = vsel %vm353, %v337, 0
        %v529 = vsel %vm353, %v338, 0
        %v532 = vsel %vm353, %v339, 0
        %v535 = vsel %vm353, %v340, 0
        %v538 = vsel %vm353, %v341, 0
        %v541 = vsel %vm353, %v342, 0
        %v544 = vsel %vm353, %v343, 0
        %546 = vmatprep.subr.mxu0 0.0
        %547 = vmatpush1.msra.mxu0 %v344
        %548 = vmatprep.subr.mxu0 0.0
        %549 = vmatpush1.msra.mxu0 %v345
        %550 = vmatprep.subr.mxu0 0.0
        %551 = vmatpush1.msra.mxu0 0.0
        %552 = vmatprep.subr.mxu0 0.0
        %553 = vmatpush1.msra.mxu0 0.0
        %554 = vmatprep.subr.mxu0 0.0
        %555 = vmatpush1.msra.mxu0 0.0
        %556 = vmatprep.subr.mxu0 0.0
        %557 = vmatpush1.msra.mxu0 0.0
        %558 = vmatprep.subr.mxu0 0.0
        %559 = vmatpush1.msra.mxu0 0.0
        %560 = vmatprep.subr.mxu0 0.0
        %561 = vmatpush1.msra.mxu0 0.0
        %562 = vmatprep.subr.mxu0 0.0
        %563 = vmatpush1.msra.mxu0 0.0
        %564 = vmatprep.subr.mxu0 0.0
        %565 = vmatpush1.msra.mxu0 0.0
        %566 = vmatprep.subr.mxu0 0.0
        %567 = vmatpush1.msra.mxu0 0.0
        %568 = vmatprep.subr.mxu0 0.0
        %569 = vmatpush1.msra.mxu0 0.0
        %570 = vmatprep.subr.mxu0 0.0
        %571 = vmatpush1.msra.mxu0 0.0
        %572 = vmatprep.subr.mxu0 0.0
        %573 = vmatpush1.msra.mxu0 0.0
        %574 = vmatprep.subr.mxu0 0.0
        %575 = vmatpush1.msra.mxu0 0.0
        %576 = vmatprep.subr.mxu0 0.0
        %577 = vmatpush1.msra.mxu0 0.0
        %578 = vmatprep.subr.mxu0 0.0
        %579 = vmatpush1.msra.mxu0 0.0
        %580 = vmatprep.subr.mxu0 0.0
        %581 = vmatpush1.msra.mxu0 0.0
        %582 = vmatprep.subr.mxu0 0.0
        %583 = vmatpush1.msra.mxu0 0.0
        %584 = vmatprep.subr.mxu0 0.0
        %585 = vmatpush1.msra.mxu0 0.0
        %586 = vmatprep.subr.mxu0 0.0
        %587 = vmatpush1.msra.mxu0 0.0
        %588 = vmatprep.subr.mxu0 0.0
        %589 = vmatpush1.msra.mxu0 0.0
        %590 = vmatprep.subr.mxu0 0.0
        %591 = vmatpush1.msra.mxu0 0.0
        %592 = vmatprep.subr.mxu0 0.0
        %593 = vmatpush1.msra.mxu0 0.0
        %594 = vmatprep.subr.mxu0 0.0
        %595 = vmatpush1.msra.mxu0 0.0
        %596 = vmatprep.subr.mxu0 0.0
        %597 = vmatpush1.msra.mxu0 0.0
        %598 = vmatprep.subr.mxu0 0.0
        %599 = vmatpush1.msra.mxu0 0.0
        %600 = vmatprep.subr.mxu0 0.0
        %601 = vmatpush1.msra.mxu0 0.0
        %602 = vmatprep.subr.mxu0 0.0
        %603 = vmatpush1.msra.mxu0 0.0
        %604 = vmatprep.subr.mxu0 0.0
        %605 = vmatpush1.msra.mxu0 0.0
        %606 = vmatprep.subr.mxu0 0.0
        %607 = vmatpush1.msra.mxu0 0.0
        %608 = vmatprep.subr.mxu0 0.0
        %609 = vmatpush1.msra.mxu0 0.0
        %610 = vmatprep.mubr.f32.mxu0 0.0
        %611 = vmatmul.mubr.f32.gmra.mrb[0].mxu0 %v355
        %v612 = vpop.f32.mrb[0].mxu0
        %v613 = vadd.f32 %v351, %v612
        %v614 = vpop.f32.mrb[0].mxu0
        %615 = vmatprep.mubr.f32.mxu0 0.0
        %616 = vmatmul.mubr.f32.gmra.mrb[0].mxu0 %v358
        %v617 = vpop.f32.mrb[0].mxu0
        %v618 = vadd.f32 %v351, %v617
        %v619 = vpop.f32.mrb[0].mxu0
        %620 = vmatprep.mubr.f32.mxu0 0.0
        %621 = vmatmul.mubr.f32.gmra.mrb[0].mxu0 %v361
        %v622 = vpop.f32.mrb[0].mxu0
        %v623 = vadd.f32 %v351, %v622
        %v624 = vpop.f32.mrb[0].mxu0
        %625 = vmatprep.mubr.f32.mxu0 0.0
        %626 = vmatmul.mubr.f32.gmra.mrb[0].mxu0 %v364
        %v627 = vpop.f32.mrb[0].mxu0
        %v628 = vadd.f32 %v351, %v627
        %v629 = vpop.f32.mrb[0].mxu0
        %630 = vmatprep.mubr.f32.mxu0 0.0
        %631 = vmatmul.mubr.f32.gmra.mrb[0].mxu0 %v367
        %v632 = vpop.f32.mrb[0].mxu0
        %v633 = vadd.f32 %v351, %v632
        %v634 = vpop.f32.mrb[0].mxu0
        %635 = vmatprep.mubr.f32.mxu0 0.0
        %636 = vmatmul.mubr.f32.gmra.mrb[0].mxu0 %v370
        %v637 = vpop.f32.mrb[0].mxu0
        %v638 = vadd.f32 %v351, %v637
        %v639 = vpop.f32.mrb[0].mxu0
        %640 = vmatprep.mubr.f32.mxu0 0.0
        %641 = vmatmul.mubr.f32.gmra.mrb[0].mxu0 %v373
        %v642 = vpop.f32.mrb[0].mxu0
        %v643 = vadd.f32 %v351, %v642
        %v644 = vpop.f32.mrb[0].mxu0
        %645 = vmatprep.mubr.f32.mxu0 0.0
        %646 = vmatmul.mubr.f32.gmra.mrb[0].mxu0 %v376
        %v647 = vpop.f32.mrb[0].mxu0
        %v648 = vadd.f32 %v351, %v647
        %v649 = vpop.f32.mrb[0].mxu0
        %650 = vmatprep.mubr.f32.mxu0 0.0
        %651 = vmatmul.mubr.f32.gmra.mrb[0].mxu0 %v379
        %v652 = vpop.f32.mrb[0].mxu0
        %v653 = vadd.f32 %v351, %v652
        %v654 = vpop.f32.mrb[0].mxu0
        %655 = vmatprep.mubr.f32.mxu0 0.0
        %656 = vmatmul.mubr.f32.gmra.mrb[0].mxu0 %v382
        %v657 = vpop.f32.mrb[0].mxu0
        %v658 = vadd.f32 %v351, %v657
        %v659 = vpop.f32.mrb[0].mxu0
        %660 = vmatprep.mubr.f32.mxu0 0.0
        %661 = vmatmul.mubr.f32.gmra.mrb[0].mxu0 %v385
        %v662 = vpop.f32.mrb[0].mxu0
        %v663 = vadd.f32 %v351, %v662
        %v664 = vpop.f32.mrb[0].mxu0
        %665 = vmatprep.mubr.f32.mxu0 0.0
        %666 = vmatmul.mubr.f32.gmra.mrb[0].mxu0 %v388
        %v667 = vpop.f32.mrb[0].mxu0
        %v668 = vadd.f32 %v351, %v667
        %v669 = vpop.f32.mrb[0].mxu0
        %670 = vmatprep.mubr.f32.mxu0 0.0
        %671 = vmatmul.mubr.f32.gmra.mrb[0].mxu0 %v391
        %v672 = vpop.f32.mrb[0].mxu0
        %v673 = vadd.f32 %v351, %v672
        %v674 = vpop.f32.mrb[0].mxu0
        %675 = vmatprep.mubr.f32.mxu0 0.0
        %676 = vmatmul.mubr.f32.gmra.mrb[0].mxu0 %v394
        %v677 = vpop.f32.mrb[0].mxu0
        %v678 = vadd.f32 %v351, %v677
        %v679 = vpop.f32.mrb[0].mxu0
        %680 = vmatprep.mubr.f32.mxu0 0.0
        %681 = vmatmul.mubr.f32.gmra.mrb[0].mxu0 %v397
        %v682 = vpop.f32.mrb[0].mxu0
        %v683 = vadd.f32 %v351, %v682
        %v684 = vpop.f32.mrb[0].mxu0
        %685 = vmatprep.mubr.f32.mxu0 0.0
        %686 = vmatmul.mubr.f32.gmra.mrb[0].mxu0 %v400
        %v687 = vpop.f32.mrb[0].mxu0
        %v688 = vadd.f32 %v351, %v687
        %v689 = vpop.f32.mrb[0].mxu0
        %690 = vmatprep.mubr.f32.mxu0 0.0
        %691 = vmatmul.mubr.f32.gmra.mrb[0].mxu0 %v403
        %v692 = vpop.f32.mrb[0].mxu0
        %v693 = vadd.f32 %v351, %v692
        %v694 = vpop.f32.mrb[0].mxu0
        %695 = vmatprep.mubr.f32.mxu0 0.0
        %696 = vmatmul.mubr.f32.gmra.mrb[0].mxu0 %v406
        %v697 = vpop.f32.mrb[0].mxu0
        %v698 = vadd.f32 %v351, %v697
        %v699 = vpop.f32.mrb[0].mxu0
        %700 = vmatprep.mubr.f32.mxu0 0.0
        %701 = vmatmul.mubr.f32.gmra.mrb[0].mxu0 %v409
        %v702 = vpop.f32.mrb[0].mxu0
        %v703 = vadd.f32 %v351, %v702
        %v704 = vpop.f32.mrb[0].mxu0
        %705 = vmatprep.mubr.f32.mxu0 0.0
        %706 = vmatmul.mubr.f32.gmra.mrb[0].mxu0 %v412
        %v707 = vpop.f32.mrb[0].mxu0
        %v708 = vadd.f32 %v351, %v707
        %v709 = vpop.f32.mrb[0].mxu0
        %710 = vmatprep.mubr.f32.mxu0 0.0
        %711 = vmatmul.mubr.f32.gmra.mrb[0].mxu0 %v415
        %v712 = vpop.f32.mrb[0].mxu0
        %v713 = vadd.f32 %v351, %v712
        %v714 = vpop.f32.mrb[0].mxu0
        %715 = vmatprep.mubr.f32.mxu0 0.0
        %716 = vmatmul.mubr.f32.gmra.mrb[0].mxu0 %v418
        %v717 = vpop.f32.mrb[0].mxu0
        %v718 = vadd.f32 %v351, %v717
        %v719 = vpop.f32.mrb[0].mxu0
        %720 = vmatprep.mubr.f32.mxu0 0.0
        %721 = vmatmul.mubr.f32.gmra.mrb[0].mxu0 %v421
        %v722 = vpop.f32.mrb[0].mxu0
        %v723 = vadd.f32 %v351, %v722
        %v724 = vpop.f32.mrb[0].mxu0
        %725 = vmatprep.mubr.f32.mxu0 0.0
        %726 = vmatmul.mubr.f32.gmra.mrb[0].mxu0 %v424
        %v727 = vpop.f32.mrb[0].mxu0
        %v728 = vadd.f32 %v351, %v727
        %v729 = vpop.f32.mrb[0].mxu0
        %730 = vmatprep.mubr.f32.mxu0 0.0
        %731 = vmatmul.mubr.f32.gmra.mrb[0].mxu0 %v427
        %v732 = vpop.f32.mrb[0].mxu0
        %v733 = vadd.f32 %v351, %v732
        %v734 = vpop.f32.mrb[0].mxu0
        %735 = vmatprep.mubr.f32.mxu0 0.0
        %736 = vmatmul.mubr.f32.gmra.mrb[0].mxu0 %v430
        %v737 = vpop.f32.mrb[0].mxu0
        %v738 = vadd.f32 %v351, %v737
        %v739 = vpop.f32.mrb[0].mxu0
        %740 = vmatprep.mubr.f32.mxu0 0.0
        %741 = vmatmul.mubr.f32.gmra.mrb[0].mxu0 %v433
        %v742 = vpop.f32.mrb[0].mxu0
        %v743 = vadd.f32 %v351, %v742
        %v744 = vpop.f32.mrb[0].mxu0
        %745 = vmatprep.mubr.f32.mxu0 0.0
        %746 = vmatmul.mubr.f32.gmra.mrb[0].mxu0 %v436
        %v747 = vpop.f32.mrb[0].mxu0
        %v748 = vadd.f32 %v351, %v747
        %v749 = vpop.f32.mrb[0].mxu0
        %750 = vmatprep.mubr.f32.mxu0 0.0
        %751 = vmatmul.mubr.f32.gmra.mrb[0].mxu0 %v439
        %v752 = vpop.f32.mrb[0].mxu0
        %v753 = vadd.f32 %v351, %v752
        %v754 = vpop.f32.mrb[0].mxu0
        %755 = vmatprep.mubr.f32.mxu0 0.0
        %756 = vmatmul.mubr.f32.gmra.mrb[0].mxu0 %v442
        %v757 = vpop.f32.mrb[0].mxu0
        %v758 = vadd.f32 %v351, %v757
        %v759 = vpop.f32.mrb[0].mxu0
        %760 = vmatprep.mubr.f32.mxu0 0.0
        %761 = vmatmul.mubr.f32.gmra.mrb[0].mxu0 %v445
        %v762 = vpop.f32.mrb[0].mxu0
        %v763 = vadd.f32 %v351, %v762
        %v764 = vpop.f32.mrb[0].mxu0
        %765 = vmatprep.mubr.f32.mxu0 0.0
        %766 = vmatmul.mubr.f32.gmra.mrb[0].mxu0 %v448
        %v767 = vpop.f32.mrb[0].mxu0
        %v768 = vadd.f32 %v351, %v767
        %v769 = vpop.f32.mrb[0].mxu0
        %770 = vmatprep.mubr.f32.mxu0 0.0
        %771 = vmatmul.mubr.f32.gmra.mrb[0].mxu0 %v451
        %v772 = vpop.f32.mrb[0].mxu0
        %v773 = vadd.f32 %v351, %v772
        %v774 = vpop.f32.mrb[0].mxu0
        %775 = vmatprep.mubr.f32.mxu0 0.0
        %776 = vmatmul.mubr.f32.gmra.mrb[0].mxu0 %v454
        %v777 = vpop.f32.mrb[0].mxu0
        %v778 = vadd.f32 %v351, %v777
        %v779 = vpop.f32.mrb[0].mxu0
        %780 = vmatprep.mubr.f32.mxu0 0.0
        %781 = vmatmul.mubr.f32.gmra.mrb[0].mxu0 %v457
        %v782 = vpop.f32.mrb[0].mxu0
        %v783 = vadd.f32 %v351, %v782
        %v784 = vpop.f32.mrb[0].mxu0
        %785 = vmatprep.mubr.f32.mxu0 0.0
        %786 = vmatmul.mubr.f32.gmra.mrb[0].mxu0 %v460
        %v787 = vpop.f32.mrb[0].mxu0
        %v788 = vadd.f32 %v351, %v787
        %v789 = vpop.f32.mrb[0].mxu0
        %790 = vmatprep.mubr.f32.mxu0 0.0
        %791 = vmatmul.mubr.f32.gmra.mrb[0].mxu0 %v463
        %v792 = vpop.f32.mrb[0].mxu0
        %v793 = vadd.f32 %v351, %v792
        %v794 = vpop.f32.mrb[0].mxu0
        %795 = vmatprep.mubr.f32.mxu0 0.0
        %796 = vmatmul.mubr.f32.gmra.mrb[0].mxu0 %v466
        %v797 = vpop.f32.mrb[0].mxu0
        %v798 = vadd.f32 %v351, %v797
        %v799 = vpop.f32.mrb[0].mxu0
        %800 = vmatprep.mubr.f32.mxu0 0.0
        %801 = vmatmul.mubr.f32.gmra.mrb[0].mxu0 %v469
        %v802 = vpop.f32.mrb[0].mxu0
        %v803 = vadd.f32 %v351, %v802
        %v804 = vpop.f32.mrb[0].mxu0
        %805 = vmatprep.mubr.f32.mxu0 0.0
        %806 = vmatmul.mubr.f32.gmra.mrb[0].mxu0 %v472
        %v807 = vpop.f32.mrb[0].mxu0
        %v808 = vadd.f32 %v351, %v807
        %v809 = vpop.f32.mrb[0].mxu0
        %810 = vmatprep.mubr.f32.mxu0 0.0
        %811 = vmatmul.mubr.f32.gmra.mrb[0].mxu0 %v475
        %v812 = vpop.f32.mrb[0].mxu0
        %v813 = vadd.f32 %v351, %v812
        %v814 = vpop.f32.mrb[0].mxu0
        %815 = vmatprep.mubr.f32.mxu0 0.0
        %816 = vmatmul.mubr.f32.gmra.mrb[0].mxu0 %v478
        %v817 = vpop.f32.mrb[0].mxu0
        %v818 = vadd.f32 %v351, %v817
        %v819 = vpop.f32.mrb[0].mxu0
        %820 = vmatprep.mubr.f32.mxu0 0.0
        %821 = vmatmul.mubr.f32.gmra.mrb[0].mxu0 %v481
        %v822 = vpop.f32.mrb[0].mxu0
        %v823 = vadd.f32 %v351, %v822
        %v824 = vpop.f32.mrb[0].mxu0
        %825 = vmatprep.mubr.f32.mxu0 0.0
        %826 = vmatmul.mubr.f32.gmra.mrb[0].mxu0 %v484
        %v827 = vpop.f32.mrb[0].mxu0
        %v828 = vadd.f32 %v351, %v827
        %v829 = vpop.f32.mrb[0].mxu0
        %830 = vmatprep.mubr.f32.mxu0 0.0
        %831 = vmatmul.mubr.f32.gmra.mrb[0].mxu0 %v487
        %v832 = vpop.f32.mrb[0].mxu0
        %v833 = vadd.f32 %v351, %v832
        %v834 = vpop.f32.mrb[0].mxu0
        %835 = vmatprep.mubr.f32.mxu0 0.0
        %836 = vmatmul.mubr.f32.gmra.mrb[0].mxu0 %v490
        %v837 = vpop.f32.mrb[0].mxu0
        %v838 = vadd.f32 %v351, %v837
        %v839 = vpop.f32.mrb[0].mxu0
        %840 = vmatprep.mubr.f32.mxu0 0.0
        %841 = vmatmul.mubr.f32.gmra.mrb[0].mxu0 %v493
        %v842 = vpop.f32.mrb[0].mxu0
        %v843 = vadd.f32 %v351, %v842
        %v844 = vpop.f32.mrb[0].mxu0
        %845 = vmatprep.mubr.f32.mxu0 0.0
        %846 = vmatmul.mubr.f32.gmra.mrb[0].mxu0 %v496
        %v847 = vpop.f32.mrb[0].mxu0
        %v848 = vadd.f32 %v351, %v847
        %v849 = vpop.f32.mrb[0].mxu0
        %850 = vmatprep.mubr.f32.mxu0 0.0
        %851 = vmatmul.mubr.f32.gmra.mrb[0].mxu0 %v499
        %v852 = vpop.f32.mrb[0].mxu0
        %v853 = vadd.f32 %v351, %v852
        %v854 = vpop.f32.mrb[0].mxu0
        %855 = vmatprep.mubr.f32.mxu0 0.0
        %856 = vmatmul.mubr.f32.gmra.mrb[0].mxu0 %v502
        %v857 = vpop.f32.mrb[0].mxu0
        %v858 = vadd.f32 %v351, %v857
        %v859 = vpop.f32.mrb[0].mxu0
        %860 = vmatprep.mubr.f32.mxu0 0.0
        %861 = vmatmul.mubr.f32.gmra.mrb[0].mxu0 %v505
        %v862 = vpop.f32.mrb[0].mxu0
        %v863 = vadd.f32 %v351, %v862
        %v864 = vpop.f32.mrb[0].mxu0
        %865 = vmatprep.mubr.f32.mxu0 0.0
        %866 = vmatmul.mubr.f32.gmra.mrb[0].mxu0 %v508
        %v867 = vpop.f32.mrb[0].mxu0
        %v868 = vadd.f32 %v351, %v867
        %v869 = vpop.f32.mrb[0].mxu0
        %870 = vmatprep.mubr.f32.mxu0 0.0
        %871 = vmatmul.mubr.f32.gmra.mrb[0].mxu0 %v511
        %v872 = vpop.f32.mrb[0].mxu0
        %v873 = vadd.f32 %v351, %v872
        %v874 = vpop.f32.mrb[0].mxu0
        %875 = vmatprep.mubr.f32.mxu0 0.0
        %876 = vmatmul.mubr.f32.gmra.mrb[0].mxu0 %v514
        %v877 = vpop.f32.mrb[0].mxu0
        %v878 = vadd.f32 %v351, %v877
        %v879 = vpop.f32.mrb[0].mxu0
        %880 = vmatprep.mubr.f32.mxu0 0.0
        %881 = vmatmul.mubr.f32.gmra.mrb[0].mxu0 %v517
        %v882 = vpop.f32.mrb[0].mxu0
        %v883 = vadd.f32 %v351, %v882
        %v884 = vpop.f32.mrb[0].mxu0
        %885 = vmatprep.mubr.f32.mxu0 0.0
        %886 = vmatmul.mubr.f32.gmra.mrb[0].mxu0 %v520
        %v887 = vpop.f32.mrb[0].mxu0
        %v888 = vadd.f32 %v351, %v887
        %v889 = vpop.f32.mrb[0].mxu0
        %890 = vmatprep.mubr.f32.mxu0 0.0
        %891 = vmatmul.mubr.f32.gmra.mrb[0].mxu0 %v523
        %v892 = vpop.f32.mrb[0].mxu0
        %v893 = vadd.f32 %v351, %v892
        %v894 = vpop.f32.mrb[0].mxu0
        %895 = vmatprep.mubr.f32.mxu0 0.0
        %896 = vmatmul.mubr.f32.gmra.mrb[0].mxu0 %v526
        %v897 = vpop.f32.mrb[0].mxu0
        %v898 = vadd.f32 %v351, %v897
        %v899 = vpop.f32.mrb[0].mxu0
        %900 = vmatprep.mubr.f32.mxu0 0.0
        %901 = vmatmul.mubr.f32.gmra.mrb[0].mxu0 %v529
        %v902 = vpop.f32.mrb[0].mxu0
        %v903 = vadd.f32 %v351, %v902
        %v904 = vpop.f32.mrb[0].mxu0
        %905 = vmatprep.mubr.f32.mxu0 0.0
        %906 = vmatmul.mubr.f32.gmra.mrb[0].mxu0 %v532
        %v907 = vpop.f32.mrb[0].mxu0
        %v908 = vadd.f32 %v351, %v907
        %v909 = vpop.f32.mrb[0].mxu0
        %910 = vmatprep.mubr.f32.mxu0 0.0
        %911 = vmatmul.mubr.f32.gmra.mrb[0].mxu0 %v535
        %v912 = vpop.f32.mrb[0].mxu0
        %v913 = vadd.f32 %v351, %v912
        %v914 = vpop.f32.mrb[0].mxu0
        %915 = vmatprep.mubr.f32.mxu0 0.0
        %916 = vmatmul.mubr.f32.gmra.mrb[0].mxu0 %v538
        %v917 = vpop.f32.mrb[0].mxu0
        %v918 = vadd.f32 %v351, %v917
        %v919 = vpop.f32.mrb[0].mxu0
        %920 = vmatprep.mubr.f32.mxu0 0.0
        %921 = vmatmul.mubr.f32.gmra.mrb[0].mxu0 %v541
        %v922 = vpop.f32.mrb[0].mxu0
        %v923 = vadd.f32 %v351, %v922
        %v924 = vpop.f32.mrb[0].mxu0
        %925 = vmatprep.mubr.f32.mxu0 0.0
        %926 = vmatmul.mubr.f32.gmra.mrb[0].mxu0 %v544
        %v927 = vpop.f32.mrb[0].mxu0
        %v928 = vadd.f32 %v351, %v927
        %v929 = vpop.f32.mrb[0].mxu0
        %930 = vdwg.mxu0
        %v931 = vtanh.pop %v613
        %v932 = vtanh.pop %v618
        %v933 = vtanh.pop %v623
        %v934 = vtanh.pop %v628
        %v935 = vtanh.pop %v633
        %v936 = vtanh.pop %v638
        %v937 = vtanh.pop %v643
        %v938 = vtanh.pop %v648
        %v939 = vtanh.pop %v653
        %v940 = vtanh.pop %v658
        %v941 = vtanh.pop %v663
        %v942 = vtanh.pop %v668
        %v943 = vtanh.pop %v673
        %v944 = vtanh.pop %v678
        %v945 = vtanh.pop %v683
        %v946 = vtanh.pop %v688
        %v947 = vtanh.pop %v693
        %v948 = vtanh.pop %v698
        %v949 = vtanh.pop %v703
        %v950 = vtanh.pop %v708
        %v951 = vtanh.pop %v713
        %v952 = vtanh.pop %v718
        %v953 = vtanh.pop %v723
        %v954 = vtanh.pop %v728
        %v955 = vtanh.pop %v733
        %v956 = vtanh.pop %v738
        %v957 = vtanh.pop %v743
        %v958 = vtanh.pop %v748
        %v959 = vtanh.pop %v753
        %v960 = vtanh.pop %v758
        %v961 = vtanh.pop %v763
        %v962 = vtanh.pop %v768
        %v963 = vtanh.pop %v773
        %v964 = vtanh.pop %v778
        %v965 = vtanh.pop %v783
        %v966 = vtanh.pop %v788
        %v967 = vtanh.pop %v793
        %v968 = vtanh.pop %v798
        %v969 = vtanh.pop %v803
        %v970 = vtanh.pop %v808
        %v971 = vtanh.pop %v813
        %v972 = vtanh.pop %v818
        %v973 = vtanh.pop %v823
        %v974 = vtanh.pop %v828
        %v975 = vtanh.pop %v833
        %v976 = vtanh.pop %v838
        %v977 = vtanh.pop %v843
        %v978 = vtanh.pop %v848
        %v979 = vtanh.pop %v853
        %v980 = vtanh.pop %v858
        %v981 = vtanh.pop %v863
        %v982 = vtanh.pop %v868
        %v983 = vtanh.pop %v873
        %v984 = vtanh.pop %v878
        %v985 = vtanh.pop %v883
        %v986 = vtanh.pop %v888
        %v987 = vtanh.pop %v893
        %v988 = vtanh.pop %v898
        %v989 = vtanh.pop %v903
        %v990 = vtanh.pop %v908
        %v991 = vtanh.pop %v913
        %v992 = vtanh.pop %v918
        %v993 = vtanh.pop %v923
        %v994 = vtanh.pop %v928
        %v995 = vld [vmem:[%s3] sm:$0xff]
        %v996 = vld [vmem:[%s3 + $0x8] sm:$0xff]
        %v997 = vld [vmem:[%s3 + $0x10] sm:$0xff]
        %v998 = vld [vmem:[%s3 + $0x18] sm:$0xff]
        %v999 = vld [vmem:[%s3 + $0x20] sm:$0xff]
        %v1000 = vld [vmem:[%s3 + $0x28] sm:$0xff]
        %v1001 = vld [vmem:[%s3 + $0x30] sm:$0xff]
        %v1002 = vld [vmem:[%s3 + $0x38] sm:$0xff]
        %v1003 = vld [vmem:[%s3 + $0x40] sm:$0xff]
        %v1004 = vld [vmem:[%s3 + $0x48] sm:$0xff]
        %v1005 = vld [vmem:[%s3 + $0x50] sm:$0xff]
        %v1006 = vld [vmem:[%s3 + $0x58] sm:$0xff]
        %v1007 = vld [vmem:[%s3 + $0x60] sm:$0xff]
        %v1008 = vld [vmem:[%s3 + $0x68] sm:$0xff]
        %v1009 = vld [vmem:[%s3 + $0x70] sm:$0xff]
        %v1010 = vld [vmem:[%s3 + $0x78] sm:$0xff]
        %v1011 = vld [vmem:[%s4] sm:$0x1]
        %v1013 = vlaneseq
        %v1014 = vshrl.u32 %v1013, 7
        %v1015 = vsub.s32 0, %v1014
        %v1016 = vrot.slane %v1011, %v1015
        %1018 = vmatprep.subr.mxu0 0.0
        %1019 = vmatpush1.msra.mxu0 %v995
        %1020 = vmatprep.subr.mxu0 0.0
        %1021 = vmatpush1.msra.mxu0 %v996
        %1022 = vmatprep.subr.mxu0 0.0
        %1023 = vmatpush1.msra.mxu0 %v997
        %1024 = vmatprep.subr.mxu0 0.0
        %1025 = vmatpush1.msra.mxu0 %v998
        %1026 = vmatprep.subr.mxu0 0.0
        %1027 = vmatpush1.msra.mxu0 %v999
        %1028 = vmatprep.subr.mxu0 0.0
        %1029 = vmatpush1.msra.mxu0 %v1000
        %1030 = vmatprep.subr.mxu0 0.0
        %1031 = vmatpush1.msra.mxu0 %v1001
        %1032 = vmatprep.subr.mxu0 0.0
        %1033 = vmatpush1.msra.mxu0 %v1002
        %1034 = vmatprep.subr.mxu0 0.0
        %1035 = vmatpush1.msra.mxu0 %v1003
        %1036 = vmatprep.subr.mxu0 0.0
        %1037 = vmatpush1.msra.mxu0 %v1004
        %1038 = vmatprep.subr.mxu0 0.0
        %1039 = vmatpush1.msra.mxu0 %v1005
        %1040 = vmatprep.subr.mxu0 0.0
        %1041 = vmatpush1.msra.mxu0 %v1006
        %1042 = vmatprep.subr.mxu0 0.0
        %1043 = vmatpush1.msra.mxu0 %v1007
        %1044 = vmatprep.subr.mxu0 0.0
        %1045 = vmatpush1.msra.mxu0 %v1008
        %1046 = vmatprep.subr.mxu0 0.0
        %1047 = vmatpush1.msra.mxu0 %v1009
        %1048 = vmatprep.subr.mxu0 0.0
        %1049 = vmatpush1.msra.mxu0 %v1010
        %1050 = vmatprep.subr.mxu0 0.0
        %1051 = vmatpush1.msra.mxu0 0.0
        %1052 = vmatprep.subr.mxu0 0.0
        %1053 = vmatpush1.msra.mxu0 0.0
        %1054 = vmatprep.subr.mxu0 0.0
        %1055 = vmatpush1.msra.mxu0 0.0
        %1056 = vmatprep.subr.mxu0 0.0
        %1057 = vmatpush1.msra.mxu0 0.0
        %1058 = vmatprep.subr.mxu0 0.0
        %1059 = vmatpush1.msra.mxu0 0.0
        %1060 = vmatprep.subr.mxu0 0.0
        %1061 = vmatpush1.msra.mxu0 0.0
        %1062 = vmatprep.subr.mxu0 0.0
        %1063 = vmatpush1.msra.mxu0 0.0
        %1064 = vmatprep.subr.mxu0 0.0
        %1065 = vmatpush1.msra.mxu0 0.0
        %1066 = vmatprep.subr.mxu0 0.0
        %1067 = vmatpush1.msra.mxu0 0.0
        %1068 = vmatprep.subr.mxu0 0.0
        %1069 = vmatpush1.msra.mxu0 0.0
        %1070 = vmatprep.subr.mxu0 0.0
        %1071 = vmatpush1.msra.mxu0 0.0
        %1072 = vmatprep.subr.mxu0 0.0
        %1073 = vmatpush1.msra.mxu0 0.0
        %1074 = vmatprep.subr.mxu0 0.0
        %1075 = vmatpush1.msra.mxu0 0.0
        %1076 = vmatprep.subr.mxu0 0.0
        %1077 = vmatpush1.msra.mxu0 0.0
        %1078 = vmatprep.subr.mxu0 0.0
        %1079 = vmatpush1.msra.mxu0 0.0
        %1080 = vmatprep.subr.mxu0 0.0
        %1081 = vmatpush1.msra.mxu0 0.0
        %1082 = vmatprep.mubr.f32.mxu0 0.0
        %1083 = vmatmul.mubr.f32.gmra.mrb[0].mxu0 %v931
        %v1084 = vpop.f32.mrb[0].mxu0
        %v1085 = vadd.f32 %v1016, %v1084
        %v1086 = vpop.f32.mrb[0].mxu0
        %1087 = vmatprep.mubr.f32.mxu0 0.0
        %1088 = vmatmul.mubr.f32.gmra.mrb[0].mxu0 %v932
        %v1089 = vpop.f32.mrb[0].mxu0
        %v1090 = vadd.f32 %v1016, %v1089
        %v1091 = vpop.f32.mrb[0].mxu0
        %1092 = vmatprep.mubr.f32.mxu0 0.0
        %1093 = vmatmul.mubr.f32.gmra.mrb[0].mxu0 %v933
        %v1094 = vpop.f32.mrb[0].mxu0
        %v1095 = vadd.f32 %v1016, %v1094
        %v1096 = vpop.f32.mrb[0].mxu0
        %1097 = vmatprep.mubr.f32.mxu0 0.0
        %1098 = vmatmul.mubr.f32.gmra.mrb[0].mxu0 %v934
        %v1099 = vpop.f32.mrb[0].mxu0
        %v1100 = vadd.f32 %v1016, %v1099
        %v1101 = vpop.f32.mrb[0].mxu0
        %1102 = vmatprep.mubr.f32.mxu0 0.0
        %1103 = vmatmul.mubr.f32.gmra.mrb[0].mxu0 %v935
        %v1104 = vpop.f32.mrb[0].mxu0
        %v1105 = vadd.f32 %v1016, %v1104
        %v1106 = vpop.f32.mrb[0].mxu0
        %1107 = vmatprep.mubr.f32.mxu0 0.0
        %1108 = vmatmul.mubr.f32.gmra.mrb[0].mxu0 %v936
        %v1109 = vpop.f32.mrb[0].mxu0
        %v1110 = vadd.f32 %v1016, %v1109
        %v1111 = vpop.f32.mrb[0].mxu0
        %1112 = vmatprep.mubr.f32.mxu0 0.0
        %1113 = vmatmul.mubr.f32.gmra.mrb[0].mxu0 %v937
        %v1114 = vpop.f32.mrb[0].mxu0
        %v1115 = vadd.f32 %v1016, %v1114
        %v1116 = vpop.f32.mrb[0].mxu0
        %1117 = vmatprep.mubr.f32.mxu0 0.0
        %1118 = vmatmul.mubr.f32.gmra.mrb[0].mxu0 %v938
        %v1119 = vpop.f32.mrb[0].mxu0
        %v1120 = vadd.f32 %v1016, %v1119
        %v1121 = vpop.f32.mrb[0].mxu0
        %1122 = vmatprep.mubr.f32.mxu0 0.0
        %1123 = vmatmul.mubr.f32.gmra.mrb[0].mxu0 %v939
        %v1124 = vpop.f32.mrb[0].mxu0
        %v1125 = vadd.f32 %v1016, %v1124
        %v1126 = vpop.f32.mrb[0].mxu0
        %1127 = vmatprep.mubr.f32.mxu0 0.0
        %1128 = vmatmul.mubr.f32.gmra.mrb[0].mxu0 %v940
        %v1129 = vpop.f32.mrb[0].mxu0
        %v1130 = vadd.f32 %v1016, %v1129
        %v1131 = vpop.f32.mrb[0].mxu0
        %1132 = vmatprep.mubr.f32.mxu0 0.0
        %1133 = vmatmul.mubr.f32.gmra.mrb[0].mxu0 %v941
        %v1134 = vpop.f32.mrb[0].mxu0
        %v1135 = vadd.f32 %v1016, %v1134
        %v1136 = vpop.f32.mrb[0].mxu0
        %1137 = vmatprep.mubr.f32.mxu0 0.0
        %1138 = vmatmul.mubr.f32.gmra.mrb[0].mxu0 %v942
        %v1139 = vpop.f32.mrb[0].mxu0
        %v1140 = vadd.f32 %v1016, %v1139
        %v1141 = vpop.f32.mrb[0].mxu0
        %1142 = vmatprep.mubr.f32.mxu0 0.0
        %1143 = vmatmul.mubr.f32.gmra.mrb[0].mxu0 %v943
        %v1144 = vpop.f32.mrb[0].mxu0
        %v1145 = vadd.f32 %v1016, %v1144
        %v1146 = vpop.f32.mrb[0].mxu0
        %1147 = vmatprep.mubr.f32.mxu0 0.0
        %1148 = vmatmul.mubr.f32.gmra.mrb[0].mxu0 %v944
        %v1149 = vpop.f32.mrb[0].mxu0
        %v1150 = vadd.f32 %v1016, %v1149
        %v1151 = vpop.f32.mrb[0].mxu0
        %1152 = vmatprep.mubr.f32.mxu0 0.0
        %1153 = vmatmul.mubr.f32.gmra.mrb[0].mxu0 %v945
        %v1154 = vpop.f32.mrb[0].mxu0
        %v1155 = vadd.f32 %v1016, %v1154
        %v1156 = vpop.f32.mrb[0].mxu0
        %1157 = vmatprep.mubr.f32.mxu0 0.0
        %1158 = vmatmul.mubr.f32.gmra.mrb[0].mxu0 %v946
        %v1159 = vpop.f32.mrb[0].mxu0
        %v1160 = vadd.f32 %v1016, %v1159
        %v1161 = vpop.f32.mrb[0].mxu0
        %1162 = vmatprep.mubr.f32.mxu0 0.0
        %1163 = vmatmul.mubr.f32.gmra.mrb[0].mxu0 %v947
        %v1164 = vpop.f32.mrb[0].mxu0
        %v1165 = vadd.f32 %v1016, %v1164
        %v1166 = vpop.f32.mrb[0].mxu0
        %1167 = vmatprep.mubr.f32.mxu0 0.0
        %1168 = vmatmul.mubr.f32.gmra.mrb[0].mxu0 %v948
        %v1169 = vpop.f32.mrb[0].mxu0
        %v1170 = vadd.f32 %v1016, %v1169
        %v1171 = vpop.f32.mrb[0].mxu0
        %1172 = vmatprep.mubr.f32.mxu0 0.0
        %1173 = vmatmul.mubr.f32.gmra.mrb[0].mxu0 %v949
        %v1174 = vpop.f32.mrb[0].mxu0
        %v1175 = vadd.f32 %v1016, %v1174
        %v1176 = vpop.f32.mrb[0].mxu0
        %1177 = vmatprep.mubr.f32.mxu0 0.0
        %1178 = vmatmul.mubr.f32.gmra.mrb[0].mxu0 %v950
        %v1179 = vpop.f32.mrb[0].mxu0
        %v1180 = vadd.f32 %v1016, %v1179
        %v1181 = vpop.f32.mrb[0].mxu0
        %1182 = vmatprep.mubr.f32.mxu0 0.0
        %1183 = vmatmul.mubr.f32.gmra.mrb[0].mxu0 %v951
        %v1184 = vpop.f32.mrb[0].mxu0
        %v1185 = vadd.f32 %v1016, %v1184
        %v1186 = vpop.f32.mrb[0].mxu0
        %1187 = vmatprep.mubr.f32.mxu0 0.0
        %1188 = vmatmul.mubr.f32.gmra.mrb[0].mxu0 %v952
        %v1189 = vpop.f32.mrb[0].mxu0
        %v1190 = vadd.f32 %v1016, %v1189
        %v1191 = vpop.f32.mrb[0].mxu0
        %1192 = vmatprep.mubr.f32.mxu0 0.0
        %1193 = vmatmul.mubr.f32.gmra.mrb[0].mxu0 %v953
        %v1194 = vpop.f32.mrb[0].mxu0
        %v1195 = vadd.f32 %v1016, %v1194
        %v1196 = vpop.f32.mrb[0].mxu0
        %1197 = vmatprep.mubr.f32.mxu0 0.0
        %1198 = vmatmul.mubr.f32.gmra.mrb[0].mxu0 %v954
        %v1199 = vpop.f32.mrb[0].mxu0
        %v1200 = vadd.f32 %v1016, %v1199
        %v1201 = vpop.f32.mrb[0].mxu0
        %1202 = vmatprep.mubr.f32.mxu0 0.0
        %1203 = vmatmul.mubr.f32.gmra.mrb[0].mxu0 %v955
        %v1204 = vpop.f32.mrb[0].mxu0
        %v1205 = vadd.f32 %v1016, %v1204
        %v1206 = vpop.f32.mrb[0].mxu0
        %1207 = vmatprep.mubr.f32.mxu0 0.0
        %1208 = vmatmul.mubr.f32.gmra.mrb[0].mxu0 %v956
        %v1209 = vpop.f32.mrb[0].mxu0
        %v1210 = vadd.f32 %v1016, %v1209
        %v1211 = vpop.f32.mrb[0].mxu0
        %1212 = vmatprep.mubr.f32.mxu0 0.0
        %1213 = vmatmul.mubr.f32.gmra.mrb[0].mxu0 %v957
        %v1214 = vpop.f32.mrb[0].mxu0
        %v1215 = vadd.f32 %v1016, %v1214
        %v1216 = vpop.f32.mrb[0].mxu0
        %1217 = vmatprep.mubr.f32.mxu0 0.0
        %1218 = vmatmul.mubr.f32.gmra.mrb[0].mxu0 %v958
        %v1219 = vpop.f32.mrb[0].mxu0
        %v1220 = vadd.f32 %v1016, %v1219
        %v1221 = vpop.f32.mrb[0].mxu0
        %1222 = vmatprep.mubr.f32.mxu0 0.0
        %1223 = vmatmul.mubr.f32.gmra.mrb[0].mxu0 %v959
        %v1224 = vpop.f32.mrb[0].mxu0
        %v1225 = vadd.f32 %v1016, %v1224
        %v1226 = vpop.f32.mrb[0].mxu0
        %1227 = vmatprep.mubr.f32.mxu0 0.0
        %1228 = vmatmul.mubr.f32.gmra.mrb[0].mxu0 %v960
        %v1229 = vpop.f32.mrb[0].mxu0
        %v1230 = vadd.f32 %v1016, %v1229
        %v1231 = vpop.f32.mrb[0].mxu0
        %1232 = vmatprep.mubr.f32.mxu0 0.0
        %1233 = vmatmul.mubr.f32.gmra.mrb[0].mxu0 %v961
        %v1234 = vpop.f32.mrb[0].mxu0
        %v1235 = vadd.f32 %v1016, %v1234
        %v1236 = vpop.f32.mrb[0].mxu0
        %1237 = vmatprep.mubr.f32.mxu0 0.0
        %1238 = vmatmul.mubr.f32.gmra.mrb[0].mxu0 %v962
        %v1239 = vpop.f32.mrb[0].mxu0
        %v1240 = vadd.f32 %v1016, %v1239
        %v1241 = vpop.f32.mrb[0].mxu0
        %1242 = vmatprep.mubr.f32.mxu0 0.0
        %1243 = vmatmul.mubr.f32.gmra.mrb[0].mxu0 %v963
        %v1244 = vpop.f32.mrb[0].mxu0
        %v1245 = vadd.f32 %v1016, %v1244
        %v1246 = vpop.f32.mrb[0].mxu0
        %1247 = vmatprep.mubr.f32.mxu0 0.0
        %1248 = vmatmul.mubr.f32.gmra.mrb[0].mxu0 %v964
        %v1249 = vpop.f32.mrb[0].mxu0
        %v1250 = vadd.f32 %v1016, %v1249
        %v1251 = vpop.f32.mrb[0].mxu0
        %1252 = vmatprep.mubr.f32.mxu0 0.0
        %1253 = vmatmul.mubr.f32.gmra.mrb[0].mxu0 %v965
        %v1254 = vpop.f32.mrb[0].mxu0
        %v1255 = vadd.f32 %v1016, %v1254
        %v1256 = vpop.f32.mrb[0].mxu0
        %1257 = vmatprep.mubr.f32.mxu0 0.0
        %1258 = vmatmul.mubr.f32.gmra.mrb[0].mxu0 %v966
        %v1259 = vpop.f32.mrb[0].mxu0
        %v1260 = vadd.f32 %v1016, %v1259
        %v1261 = vpop.f32.mrb[0].mxu0
        %1262 = vmatprep.mubr.f32.mxu0 0.0
        %1263 = vmatmul.mubr.f32.gmra.mrb[0].mxu0 %v967
        %v1264 = vpop.f32.mrb[0].mxu0
        %v1265 = vadd.f32 %v1016, %v1264
        %v1266 = vpop.f32.mrb[0].mxu0
        %1267 = vmatprep.mubr.f32.mxu0 0.0
        %1268 = vmatmul.mubr.f32.gmra.mrb[0].mxu0 %v968
        %v1269 = vpop.f32.mrb[0].mxu0
        %v1270 = vadd.f32 %v1016, %v1269
        %v1271 = vpop.f32.mrb[0].mxu0
        %1272 = vmatprep.mubr.f32.mxu0 0.0
        %1273 = vmatmul.mubr.f32.gmra.mrb[0].mxu0 %v969
        %v1274 = vpop.f32.mrb[0].mxu0
        %v1275 = vadd.f32 %v1016, %v1274
        %v1276 = vpop.f32.mrb[0].mxu0
        %1277 = vmatprep.mubr.f32.mxu0 0.0
        %1278 = vmatmul.mubr.f32.gmra.mrb[0].mxu0 %v970
        %v1279 = vpop.f32.mrb[0].mxu0
        %v1280 = vadd.f32 %v1016, %v1279
        %v1281 = vpop.f32.mrb[0].mxu0
        %1282 = vmatprep.mubr.f32.mxu0 0.0
        %1283 = vmatmul.mubr.f32.gmra.mrb[0].mxu0 %v971
        %v1284 = vpop.f32.mrb[0].mxu0
        %v1285 = vadd.f32 %v1016, %v1284
        %v1286 = vpop.f32.mrb[0].mxu0
        %1287 = vmatprep.mubr.f32.mxu0 0.0
        %1288 = vmatmul.mubr.f32.gmra.mrb[0].mxu0 %v972
        %v1289 = vpop.f32.mrb[0].mxu0
        %v1290 = vadd.f32 %v1016, %v1289
        %v1291 = vpop.f32.mrb[0].mxu0
        %1292 = vmatprep.mubr.f32.mxu0 0.0
        %1293 = vmatmul.mubr.f32.gmra.mrb[0].mxu0 %v973
        %v1294 = vpop.f32.mrb[0].mxu0
        %v1295 = vadd.f32 %v1016, %v1294
        %v1296 = vpop.f32.mrb[0].mxu0
        %1297 = vmatprep.mubr.f32.mxu0 0.0
        %1298 = vmatmul.mubr.f32.gmra.mrb[0].mxu0 %v974
        %v1299 = vpop.f32.mrb[0].mxu0
        %v1300 = vadd.f32 %v1016, %v1299
        %v1301 = vpop.f32.mrb[0].mxu0
        %1302 = vmatprep.mubr.f32.mxu0 0.0
        %1303 = vmatmul.mubr.f32.gmra.mrb[0].mxu0 %v975
        %v1304 = vpop.f32.mrb[0].mxu0
        %v1305 = vadd.f32 %v1016, %v1304
        %v1306 = vpop.f32.mrb[0].mxu0
        %1307 = vmatprep.mubr.f32.mxu0 0.0
        %1308 = vmatmul.mubr.f32.gmra.mrb[0].mxu0 %v976
        %v1309 = vpop.f32.mrb[0].mxu0
        %v1310 = vadd.f32 %v1016, %v1309
        %v1311 = vpop.f32.mrb[0].mxu0
        %1312 = vmatprep.mubr.f32.mxu0 0.0
        %1313 = vmatmul.mubr.f32.gmra.mrb[0].mxu0 %v977
        %v1314 = vpop.f32.mrb[0].mxu0
        %v1315 = vadd.f32 %v1016, %v1314
        %v1316 = vpop.f32.mrb[0].mxu0
        %1317 = vmatprep.mubr.f32.mxu0 0.0
        %1318 = vmatmul.mubr.f32.gmra.mrb[0].mxu0 %v978
        %v1319 = vpop.f32.mrb[0].mxu0
        %v1320 = vadd.f32 %v1016, %v1319
        %v1321 = vpop.f32.mrb[0].mxu0
        %1322 = vmatprep.mubr.f32.mxu0 0.0
        %1323 = vmatmul.mubr.f32.gmra.mrb[0].mxu0 %v979
        %v1324 = vpop.f32.mrb[0].mxu0
        %v1325 = vadd.f32 %v1016, %v1324
        %v1326 = vpop.f32.mrb[0].mxu0
        %1327 = vmatprep.mubr.f32.mxu0 0.0
        %1328 = vmatmul.mubr.f32.gmra.mrb[0].mxu0 %v980
        %v1329 = vpop.f32.mrb[0].mxu0
        %v1330 = vadd.f32 %v1016, %v1329
        %v1331 = vpop.f32.mrb[0].mxu0
        %1332 = vmatprep.mubr.f32.mxu0 0.0
        %1333 = vmatmul.mubr.f32.gmra.mrb[0].mxu0 %v981
        %v1334 = vpop.f32.mrb[0].mxu0
        %v1335 = vadd.f32 %v1016, %v1334
        %v1336 = vpop.f32.mrb[0].mxu0
        %1337 = vmatprep.mubr.f32.mxu0 0.0
        %1338 = vmatmul.mubr.f32.gmra.mrb[0].mxu0 %v982
        %v1339 = vpop.f32.mrb[0].mxu0
        %v1340 = vadd.f32 %v1016, %v1339
        %v1341 = vpop.f32.mrb[0].mxu0
        %1342 = vmatprep.mubr.f32.mxu0 0.0
        %1343 = vmatmul.mubr.f32.gmra.mrb[0].mxu0 %v983
        %v1344 = vpop.f32.mrb[0].mxu0
        %v1345 = vadd.f32 %v1016, %v1344
        %v1346 = vpop.f32.mrb[0].mxu0
        %1347 = vmatprep.mubr.f32.mxu0 0.0
        %1348 = vmatmul.mubr.f32.gmra.mrb[0].mxu0 %v984
        %v1349 = vpop.f32.mrb[0].mxu0
        %v1350 = vadd.f32 %v1016, %v1349
        %v1351 = vpop.f32.mrb[0].mxu0
        %1352 = vmatprep.mubr.f32.mxu0 0.0
        %1353 = vmatmul.mubr.f32.gmra.mrb[0].mxu0 %v985
        %v1354 = vpop.f32.mrb[0].mxu0
        %v1355 = vadd.f32 %v1016, %v1354
        %v1356 = vpop.f32.mrb[0].mxu0
        %1357 = vmatprep.mubr.f32.mxu0 0.0
        %1358 = vmatmul.mubr.f32.gmra.mrb[0].mxu0 %v986
        %v1359 = vpop.f32.mrb[0].mxu0
        %v1360 = vadd.f32 %v1016, %v1359
        %v1361 = vpop.f32.mrb[0].mxu0
        %1362 = vmatprep.mubr.f32.mxu0 0.0
        %1363 = vmatmul.mubr.f32.gmra.mrb[0].mxu0 %v987
        %v1364 = vpop.f32.mrb[0].mxu0
        %v1365 = vadd.f32 %v1016, %v1364
        %v1366 = vpop.f32.mrb[0].mxu0
        %1367 = vmatprep.mubr.f32.mxu0 0.0
        %1368 = vmatmul.mubr.f32.gmra.mrb[0].mxu0 %v988
        %v1369 = vpop.f32.mrb[0].mxu0
        %v1370 = vadd.f32 %v1016, %v1369
        %v1371 = vpop.f32.mrb[0].mxu0
        %1372 = vmatprep.mubr.f32.mxu0 0.0
        %1373 = vmatmul.mubr.f32.gmra.mrb[0].mxu0 %v989
        %v1374 = vpop.f32.mrb[0].mxu0
        %v1375 = vadd.f32 %v1016, %v1374
        %v1376 = vpop.f32.mrb[0].mxu0
        %1377 = vmatprep.mubr.f32.mxu0 0.0
        %1378 = vmatmul.mubr.f32.gmra.mrb[0].mxu0 %v990
        %v1379 = vpop.f32.mrb[0].mxu0
        %v1380 = vadd.f32 %v1016, %v1379
        %v1381 = vpop.f32.mrb[0].mxu0
        %1382 = vmatprep.mubr.f32.mxu0 0.0
        %1383 = vmatmul.mubr.f32.gmra.mrb[0].mxu0 %v991
        %v1384 = vpop.f32.mrb[0].mxu0
        %v1385 = vadd.f32 %v1016, %v1384
        %v1386 = vpop.f32.mrb[0].mxu0
        %1387 = vmatprep.mubr.f32.mxu0 0.0
        %1388 = vmatmul.mubr.f32.gmra.mrb[0].mxu0 %v992
        %v1389 = vpop.f32.mrb[0].mxu0
        %v1390 = vadd.f32 %v1016, %v1389
        %v1391 = vpop.f32.mrb[0].mxu0
        %1392 = vmatprep.mubr.f32.mxu0 0.0
        %1393 = vmatmul.mubr.f32.gmra.mrb[0].mxu0 %v993
        %v1394 = vpop.f32.mrb[0].mxu0
        %v1395 = vadd.f32 %v1016, %v1394
        %v1396 = vpop.f32.mrb[0].mxu0
        %1397 = vmatprep.mubr.f32.mxu0 0.0
        %1398 = vmatmul.mubr.f32.gmra.mrb[0].mxu0 %v994
        %v1399 = vpop.f32.mrb[0].mxu0
        %v1400 = vadd.f32 %v1016, %v1399
        %v1401 = vpop.f32.mrb[0].mxu0
        %1402 = vdwg.mxu0
        %v1403 = vtanh.pop %v1085
        %v1404 = vtanh.pop %v1090
        %v1405 = vtanh.pop %v1095
        %v1406 = vtanh.pop %v1100
        %v1407 = vtanh.pop %v1105
        %v1408 = vtanh.pop %v1110
        %v1409 = vtanh.pop %v1115
        %v1410 = vtanh.pop %v1120
        %v1411 = vtanh.pop %v1125
        %v1412 = vtanh.pop %v1130
        %v1413 = vtanh.pop %v1135
        %v1414 = vtanh.pop %v1140
        %v1415 = vtanh.pop %v1145
        %v1416 = vtanh.pop %v1150
        %v1417 = vtanh.pop %v1155
        %v1418 = vtanh.pop %v1160
        %v1419 = vtanh.pop %v1165
        %v1420 = vtanh.pop %v1170
        %v1421 = vtanh.pop %v1175
        %v1422 = vtanh.pop %v1180
        %v1423 = vtanh.pop %v1185
        %v1424 = vtanh.pop %v1190
        %v1425 = vtanh.pop %v1195
        %v1426 = vtanh.pop %v1200
        %v1427 = vtanh.pop %v1205
        %v1428 = vtanh.pop %v1210
        %v1429 = vtanh.pop %v1215
        %v1430 = vtanh.pop %v1220
        %v1431 = vtanh.pop %v1225
        %v1432 = vtanh.pop %v1230
        %v1433 = vtanh.pop %v1235
        %v1434 = vtanh.pop %v1240
        %v1435 = vtanh.pop %v1245
        %v1436 = vtanh.pop %v1250
        %v1437 = vtanh.pop %v1255
        %v1438 = vtanh.pop %v1260
        %v1439 = vtanh.pop %v1265
        %v1440 = vtanh.pop %v1270
        %v1441 = vtanh.pop %v1275
        %v1442 = vtanh.pop %v1280
        %v1443 = vtanh.pop %v1285
        %v1444 = vtanh.pop %v1290
        %v1445 = vtanh.pop %v1295
        %v1446 = vtanh.pop %v1300
        %v1447 = vtanh.pop %v1305
        %v1448 = vtanh.pop %v1310
        %v1449 = vtanh.pop %v1315
        %v1450 = vtanh.pop %v1320
        %v1451 = vtanh.pop %v1325
        %v1452 = vtanh.pop %v1330
        %v1453 = vtanh.pop %v1335
        %v1454 = vtanh.pop %v1340
        %v1455 = vtanh.pop %v1345
        %v1456 = vtanh.pop %v1350
        %v1457 = vtanh.pop %v1355
        %v1458 = vtanh.pop %v1360
        %v1459 = vtanh.pop %v1365
        %v1460 = vtanh.pop %v1370
        %v1461 = vtanh.pop %v1375
        %v1462 = vtanh.pop %v1380
        %v1463 = vtanh.pop %v1385
        %v1464 = vtanh.pop %v1390
        %v1465 = vtanh.pop %v1395
        %v1466 = vtanh.pop %v1400
        %v1467 = vld [vmem:[%s5] sm:$0xff]
        %v1468 = vld [vmem:[%s5 + $0x8] sm:$0xff]
        %v1469 = vld [vmem:[%s5 + $0x10] sm:$0xff]
        %v1470 = vld [vmem:[%s5 + $0x18] sm:$0xff]
        %v1471 = vld [vmem:[%s5 + $0x20] sm:$0xff]
        %v1472 = vld [vmem:[%s5 + $0x28] sm:$0xff]
        %v1473 = vld [vmem:[%s5 + $0x30] sm:$0xff]
        %v1474 = vld [vmem:[%s5 + $0x38] sm:$0xff]
        %v1475 = vld [vmem:[%s5 + $0x40] sm:$0xff]
        %v1476 = vld [vmem:[%s5 + $0x48] sm:$0xff]
        %v1477 = vld [vmem:[%s5 + $0x50] sm:$0xff]
        %v1478 = vld [vmem:[%s5 + $0x58] sm:$0xff]
        %v1479 = vld [vmem:[%s5 + $0x60] sm:$0xff]
        %v1480 = vld [vmem:[%s5 + $0x68] sm:$0xff]
        %v1481 = vld [vmem:[%s5 + $0x70] sm:$0xff]
        %v1482 = vld [vmem:[%s5 + $0x78] sm:$0xff]
        %v1483 = vld [vmem:[%s6] sm:$0x1]
        %v1485 = vlaneseq
        %v1486 = vshrl.u32 %v1485, 7
        %v1487 = vsub.s32 0, %v1486
        %v1488 = vrot.slane %v1483, %v1487
        %1490 = vmatprep.subr.mxu0 0.0
        %1491 = vmatpush1.msra.mxu0 %v1467
        %1492 = vmatprep.subr.mxu0 0.0
        %1493 = vmatpush1.msra.mxu0 %v1468
        %1494 = vmatprep.subr.mxu0 0.0
        %1495 = vmatpush1.msra.mxu0 %v1469
        %1496 = vmatprep.subr.mxu0 0.0
        %1497 = vmatpush1.msra.mxu0 %v1470
        %1498 = vmatprep.subr.mxu0 0.0
        %1499 = vmatpush1.msra.mxu0 %v1471
        %1500 = vmatprep.subr.mxu0 0.0
        %1501 = vmatpush1.msra.mxu0 %v1472
        %1502 = vmatprep.subr.mxu0 0.0
        %1503 = vmatpush1.msra.mxu0 %v1473
        %1504 = vmatprep.subr.mxu0 0.0
        %1505 = vmatpush1.msra.mxu0 %v1474
        %1506 = vmatprep.subr.mxu0 0.0
        %1507 = vmatpush1.msra.mxu0 %v1475
        %1508 = vmatprep.subr.mxu0 0.0
        %1509 = vmatpush1.msra.mxu0 %v1476
        %1510 = vmatprep.subr.mxu0 0.0
        %1511 = vmatpush1.msra.mxu0 %v1477
        %1512 = vmatprep.subr.mxu0 0.0
        %1513 = vmatpush1.msra.mxu0 %v1478
        %1514 = vmatprep.subr.mxu0 0.0
        %1515 = vmatpush1.msra.mxu0 %v1479
        %1516 = vmatprep.subr.mxu0 0.0
        %1517 = vmatpush1.msra.mxu0 %v1480
        %1518 = vmatprep.subr.mxu0 0.0
        %1519 = vmatpush1.msra.mxu0 %v1481
        %1520 = vmatprep.subr.mxu0 0.0
        %1521 = vmatpush1.msra.mxu0 %v1482
        %1522 = vmatprep.subr.mxu0 0.0
        %1523 = vmatpush1.msra.mxu0 0.0
        %1524 = vmatprep.subr.mxu0 0.0
        %1525 = vmatpush1.msra.mxu0 0.0
        %1526 = vmatprep.subr.mxu0 0.0
        %1527 = vmatpush1.msra.mxu0 0.0
        %1528 = vmatprep.subr.mxu0 0.0
        %1529 = vmatpush1.msra.mxu0 0.0
        %1530 = vmatprep.subr.mxu0 0.0
        %1531 = vmatpush1.msra.mxu0 0.0
        %1532 = vmatprep.subr.mxu0 0.0
        %1533 = vmatpush1.msra.mxu0 0.0
        %1534 = vmatprep.subr.mxu0 0.0
        %1535 = vmatpush1.msra.mxu0 0.0
        %1536 = vmatprep.subr.mxu0 0.0
        %1537 = vmatpush1.msra.mxu0 0.0
        %1538 = vmatprep.subr.mxu0 0.0
        %1539 = vmatpush1.msra.mxu0 0.0
        %1540 = vmatprep.subr.mxu0 0.0
        %1541 = vmatpush1.msra.mxu0 0.0
        %1542 = vmatprep.subr.mxu0 0.0
        %1543 = vmatpush1.msra.mxu0 0.0
        %1544 = vmatprep.subr.mxu0 0.0
        %1545 = vmatpush1.msra.mxu0 0.0
        %1546 = vmatprep.subr.mxu0 0.0
        %1547 = vmatpush1.msra.mxu0 0.0
        %1548 = vmatprep.subr.mxu0 0.0
        %1549 = vmatpush1.msra.mxu0 0.0
        %1550 = vmatprep.subr.mxu0 0.0
        %1551 = vmatpush1.msra.mxu0 0.0
        %1552 = vmatprep.subr.mxu0 0.0
        %1553 = vmatpush1.msra.mxu0 0.0
        %1554 = vmatprep.mubr.f32.mxu0 0.0
        %1555 = vmatmul.mubr.f32.gmra.mrb[0].mxu0 %v1403
        %v1556 = vpop.f32.mrb[0].mxu0
        %v1557 = vadd.f32 %v1488, %v1556
        %v1558 = vpop.f32.mrb[0].mxu0
        %1559 = vmatprep.mubr.f32.mxu0 0.0
        %1560 = vmatmul.mubr.f32.gmra.mrb[0].mxu0 %v1404
        %v1561 = vpop.f32.mrb[0].mxu0
        %v1562 = vadd.f32 %v1488, %v1561
        %v1563 = vpop.f32.mrb[0].mxu0
        %1564 = vmatprep.mubr.f32.mxu0 0.0
        %1565 = vmatmul.mubr.f32.gmra.mrb[0].mxu0 %v1405
        %v1566 = vpop.f32.mrb[0].mxu0
        %v1567 = vadd.f32 %v1488, %v1566
        %v1568 = vpop.f32.mrb[0].mxu0
        %1569 = vmatprep.mubr.f32.mxu0 0.0
        %1570 = vmatmul.mubr.f32.gmra.mrb[0].mxu0 %v1406
        %v1571 = vpop.f32.mrb[0].mxu0
        %v1572 = vadd.f32 %v1488, %v1571
        %v1573 = vpop.f32.mrb[0].mxu0
        %1574 = vmatprep.mubr.f32.mxu0 0.0
        %1575 = vmatmul.mubr.f32.gmra.mrb[0].mxu0 %v1407
        %v1576 = vpop.f32.mrb[0].mxu0
        %v1577 = vadd.f32 %v1488, %v1576
        %v1578 = vpop.f32.mrb[0].mxu0
        %1579 = vmatprep.mubr.f32.mxu0 0.0
        %1580 = vmatmul.mubr.f32.gmra.mrb[0].mxu0 %v1408
        %v1581 = vpop.f32.mrb[0].mxu0
        %v1582 = vadd.f32 %v1488, %v1581
        %v1583 = vpop.f32.mrb[0].mxu0
        %1584 = vmatprep.mubr.f32.mxu0 0.0
        %1585 = vmatmul.mubr.f32.gmra.mrb[0].mxu0 %v1409
        %v1586 = vpop.f32.mrb[0].mxu0
        %v1587 = vadd.f32 %v1488, %v1586
        %v1588 = vpop.f32.mrb[0].mxu0
        %1589 = vmatprep.mubr.f32.mxu0 0.0
        %1590 = vmatmul.mubr.f32.gmra.mrb[0].mxu0 %v1410
        %v1591 = vpop.f32.mrb[0].mxu0
        %v1592 = vadd.f32 %v1488, %v1591
        %v1593 = vpop.f32.mrb[0].mxu0
        %1594 = vmatprep.mubr.f32.mxu0 0.0
        %1595 = vmatmul.mubr.f32.gmra.mrb[0].mxu0 %v1411
        %v1596 = vpop.f32.mrb[0].mxu0
        %v1597 = vadd.f32 %v1488, %v1596
        %v1598 = vpop.f32.mrb[0].mxu0
        %1599 = vmatprep.mubr.f32.mxu0 0.0
        %1600 = vmatmul.mubr.f32.gmra.mrb[0].mxu0 %v1412
        %v1601 = vpop.f32.mrb[0].mxu0
        %v1602 = vadd.f32 %v1488, %v1601
        %v1603 = vpop.f32.mrb[0].mxu0
        %1604 = vmatprep.mubr.f32.mxu0 0.0
        %1605 = vmatmul.mubr.f32.gmra.mrb[0].mxu0 %v1413
        %v1606 = vpop.f32.mrb[0].mxu0
        %v1607 = vadd.f32 %v1488, %v1606
        %v1608 = vpop.f32.mrb[0].mxu0
        %1609 = vmatprep.mubr.f32.mxu0 0.0
        %1610 = vmatmul.mubr.f32.gmra.mrb[0].mxu0 %v1414
        %v1611 = vpop.f32.mrb[0].mxu0
        %v1612 = vadd.f32 %v1488, %v1611
        %v1613 = vpop.f32.mrb[0].mxu0
        %1614 = vmatprep.mubr.f32.mxu0 0.0
        %1615 = vmatmul.mubr.f32.gmra.mrb[0].mxu0 %v1415
        %v1616 = vpop.f32.mrb[0].mxu0
        %v1617 = vadd.f32 %v1488, %v1616
        %v1618 = vpop.f32.mrb[0].mxu0
        %1619 = vmatprep.mubr.f32.mxu0 0.0
        %1620 = vmatmul.mubr.f32.gmra.mrb[0].mxu0 %v1416
        %v1621 = vpop.f32.mrb[0].mxu0
        %v1622 = vadd.f32 %v1488, %v1621
        %v1623 = vpop.f32.mrb[0].mxu0
        %1624 = vmatprep.mubr.f32.mxu0 0.0
        %1625 = vmatmul.mubr.f32.gmra.mrb[0].mxu0 %v1417
        %v1626 = vpop.f32.mrb[0].mxu0
        %v1627 = vadd.f32 %v1488, %v1626
        %v1628 = vpop.f32.mrb[0].mxu0
        %1629 = vmatprep.mubr.f32.mxu0 0.0
        %1630 = vmatmul.mubr.f32.gmra.mrb[0].mxu0 %v1418
        %v1631 = vpop.f32.mrb[0].mxu0
        %v1632 = vadd.f32 %v1488, %v1631
        %v1633 = vpop.f32.mrb[0].mxu0
        %1634 = vmatprep.mubr.f32.mxu0 0.0
        %1635 = vmatmul.mubr.f32.gmra.mrb[0].mxu0 %v1419
        %v1636 = vpop.f32.mrb[0].mxu0
        %v1637 = vadd.f32 %v1488, %v1636
        %v1638 = vpop.f32.mrb[0].mxu0
        %1639 = vmatprep.mubr.f32.mxu0 0.0
        %1640 = vmatmul.mubr.f32.gmra.mrb[0].mxu0 %v1420
        %v1641 = vpop.f32.mrb[0].mxu0
        %v1642 = vadd.f32 %v1488, %v1641
        %v1643 = vpop.f32.mrb[0].mxu0
        %1644 = vmatprep.mubr.f32.mxu0 0.0
        %1645 = vmatmul.mubr.f32.gmra.mrb[0].mxu0 %v1421
        %v1646 = vpop.f32.mrb[0].mxu0
        %v1647 = vadd.f32 %v1488, %v1646
        %v1648 = vpop.f32.mrb[0].mxu0
        %1649 = vmatprep.mubr.f32.mxu0 0.0
        %1650 = vmatmul.mubr.f32.gmra.mrb[0].mxu0 %v1422
        %v1651 = vpop.f32.mrb[0].mxu0
        %v1652 = vadd.f32 %v1488, %v1651
        %v1653 = vpop.f32.mrb[0].mxu0
        %1654 = vmatprep.mubr.f32.mxu0 0.0
        %1655 = vmatmul.mubr.f32.gmra.mrb[0].mxu0 %v1423
        %v1656 = vpop.f32.mrb[0].mxu0
        %v1657 = vadd.f32 %v1488, %v1656
        %v1658 = vpop.f32.mrb[0].mxu0
        %1659 = vmatprep.mubr.f32.mxu0 0.0
        %1660 = vmatmul.mubr.f32.gmra.mrb[0].mxu0 %v1424
        %v1661 = vpop.f32.mrb[0].mxu0
        %v1662 = vadd.f32 %v1488, %v1661
        %v1663 = vpop.f32.mrb[0].mxu0
        %1664 = vmatprep.mubr.f32.mxu0 0.0
        %1665 = vmatmul.mubr.f32.gmra.mrb[0].mxu0 %v1425
        %v1666 = vpop.f32.mrb[0].mxu0
        %v1667 = vadd.f32 %v1488, %v1666
        %v1668 = vpop.f32.mrb[0].mxu0
        %1669 = vmatprep.mubr.f32.mxu0 0.0
        %1670 = vmatmul.mubr.f32.gmra.mrb[0].mxu0 %v1426
        %v1671 = vpop.f32.mrb[0].mxu0
        %v1672 = vadd.f32 %v1488, %v1671
        %v1673 = vpop.f32.mrb[0].mxu0
        %1674 = vmatprep.mubr.f32.mxu0 0.0
        %1675 = vmatmul.mubr.f32.gmra.mrb[0].mxu0 %v1427
        %v1676 = vpop.f32.mrb[0].mxu0
        %v1677 = vadd.f32 %v1488, %v1676
        %v1678 = vpop.f32.mrb[0].mxu0
        %1679 = vmatprep.mubr.f32.mxu0 0.0
        %1680 = vmatmul.mubr.f32.gmra.mrb[0].mxu0 %v1428
        %v1681 = vpop.f32.mrb[0].mxu0
        %v1682 = vadd.f32 %v1488, %v1681
        %v1683 = vpop.f32.mrb[0].mxu0
        %1684 = vmatprep.mubr.f32.mxu0 0.0
        %1685 = vmatmul.mubr.f32.gmra.mrb[0].mxu0 %v1429
        %v1686 = vpop.f32.mrb[0].mxu0
        %v1687 = vadd.f32 %v1488, %v1686
        %v1688 = vpop.f32.mrb[0].mxu0
        %1689 = vmatprep.mubr.f32.mxu0 0.0
        %1690 = vmatmul.mubr.f32.gmra.mrb[0].mxu0 %v1430
        %v1691 = vpop.f32.mrb[0].mxu0
        %v1692 = vadd.f32 %v1488, %v1691
        %v1693 = vpop.f32.mrb[0].mxu0
        %1694 = vmatprep.mubr.f32.mxu0 0.0
        %1695 = vmatmul.mubr.f32.gmra.mrb[0].mxu0 %v1431
        %v1696 = vpop.f32.mrb[0].mxu0
        %v1697 = vadd.f32 %v1488, %v1696
        %v1698 = vpop.f32.mrb[0].mxu0
        %1699 = vmatprep.mubr.f32.mxu0 0.0
        %1700 = vmatmul.mubr.f32.gmra.mrb[0].mxu0 %v1432
        %v1701 = vpop.f32.mrb[0].mxu0
        %v1702 = vadd.f32 %v1488, %v1701
        %v1703 = vpop.f32.mrb[0].mxu0
        %1704 = vmatprep.mubr.f32.mxu0 0.0
        %1705 = vmatmul.mubr.f32.gmra.mrb[0].mxu0 %v1433
        %v1706 = vpop.f32.mrb[0].mxu0
        %v1707 = vadd.f32 %v1488, %v1706
        %v1708 = vpop.f32.mrb[0].mxu0
        %1709 = vmatprep.mubr.f32.mxu0 0.0
        %1710 = vmatmul.mubr.f32.gmra.mrb[0].mxu0 %v1434
        %v1711 = vpop.f32.mrb[0].mxu0
        %v1712 = vadd.f32 %v1488, %v1711
        %v1713 = vpop.f32.mrb[0].mxu0
        %1714 = vmatprep.mubr.f32.mxu0 0.0
        %1715 = vmatmul.mubr.f32.gmra.mrb[0].mxu0 %v1435
        %v1716 = vpop.f32.mrb[0].mxu0
        %v1717 = vadd.f32 %v1488, %v1716
        %v1718 = vpop.f32.mrb[0].mxu0
        %1719 = vmatprep.mubr.f32.mxu0 0.0
        %1720 = vmatmul.mubr.f32.gmra.mrb[0].mxu0 %v1436
        %v1721 = vpop.f32.mrb[0].mxu0
        %v1722 = vadd.f32 %v1488, %v1721
        %v1723 = vpop.f32.mrb[0].mxu0
        %1724 = vmatprep.mubr.f32.mxu0 0.0
        %1725 = vmatmul.mubr.f32.gmra.mrb[0].mxu0 %v1437
        %v1726 = vpop.f32.mrb[0].mxu0
        %v1727 = vadd.f32 %v1488, %v1726
        %v1728 = vpop.f32.mrb[0].mxu0
        %1729 = vmatprep.mubr.f32.mxu0 0.0
        %1730 = vmatmul.mubr.f32.gmra.mrb[0].mxu0 %v1438
        %v1731 = vpop.f32.mrb[0].mxu0
        %v1732 = vadd.f32 %v1488, %v1731
        %v1733 = vpop.f32.mrb[0].mxu0
        %1734 = vmatprep.mubr.f32.mxu0 0.0
        %1735 = vmatmul.mubr.f32.gmra.mrb[0].mxu0 %v1439
        %v1736 = vpop.f32.mrb[0].mxu0
        %v1737 = vadd.f32 %v1488, %v1736
        %v1738 = vpop.f32.mrb[0].mxu0
        %1739 = vmatprep.mubr.f32.mxu0 0.0
        %1740 = vmatmul.mubr.f32.gmra.mrb[0].mxu0 %v1440
        %v1741 = vpop.f32.mrb[0].mxu0
        %v1742 = vadd.f32 %v1488, %v1741
        %v1743 = vpop.f32.mrb[0].mxu0
        %1744 = vmatprep.mubr.f32.mxu0 0.0
        %1745 = vmatmul.mubr.f32.gmra.mrb[0].mxu0 %v1441
        %v1746 = vpop.f32.mrb[0].mxu0
        %v1747 = vadd.f32 %v1488, %v1746
        %v1748 = vpop.f32.mrb[0].mxu0
        %1749 = vmatprep.mubr.f32.mxu0 0.0
        %1750 = vmatmul.mubr.f32.gmra.mrb[0].mxu0 %v1442
        %v1751 = vpop.f32.mrb[0].mxu0
        %v1752 = vadd.f32 %v1488, %v1751
        %v1753 = vpop.f32.mrb[0].mxu0
        %1754 = vmatprep.mubr.f32.mxu0 0.0
        %1755 = vmatmul.mubr.f32.gmra.mrb[0].mxu0 %v1443
        %v1756 = vpop.f32.mrb[0].mxu0
        %v1757 = vadd.f32 %v1488, %v1756
        %v1758 = vpop.f32.mrb[0].mxu0
        %1759 = vmatprep.mubr.f32.mxu0 0.0
        %1760 = vmatmul.mubr.f32.gmra.mrb[0].mxu0 %v1444
        %v1761 = vpop.f32.mrb[0].mxu0
        %v1762 = vadd.f32 %v1488, %v1761
        %v1763 = vpop.f32.mrb[0].mxu0
        %1764 = vmatprep.mubr.f32.mxu0 0.0
        %1765 = vmatmul.mubr.f32.gmra.mrb[0].mxu0 %v1445
        %v1766 = vpop.f32.mrb[0].mxu0
        %v1767 = vadd.f32 %v1488, %v1766
        %v1768 = vpop.f32.mrb[0].mxu0
        %1769 = vmatprep.mubr.f32.mxu0 0.0
        %1770 = vmatmul.mubr.f32.gmra.mrb[0].mxu0 %v1446
        %v1771 = vpop.f32.mrb[0].mxu0
        %v1772 = vadd.f32 %v1488, %v1771
        %v1773 = vpop.f32.mrb[0].mxu0
        %1774 = vmatprep.mubr.f32.mxu0 0.0
        %1775 = vmatmul.mubr.f32.gmra.mrb[0].mxu0 %v1447
        %v1776 = vpop.f32.mrb[0].mxu0
        %v1777 = vadd.f32 %v1488, %v1776
        %v1778 = vpop.f32.mrb[0].mxu0
        %1779 = vmatprep.mubr.f32.mxu0 0.0
        %1780 = vmatmul.mubr.f32.gmra.mrb[0].mxu0 %v1448
        %v1781 = vpop.f32.mrb[0].mxu0
        %v1782 = vadd.f32 %v1488, %v1781
        %v1783 = vpop.f32.mrb[0].mxu0
        %1784 = vmatprep.mubr.f32.mxu0 0.0
        %1785 = vmatmul.mubr.f32.gmra.mrb[0].mxu0 %v1449
        %v1786 = vpop.f32.mrb[0].mxu0
        %v1787 = vadd.f32 %v1488, %v1786
        %v1788 = vpop.f32.mrb[0].mxu0
        %1789 = vmatprep.mubr.f32.mxu0 0.0
        %1790 = vmatmul.mubr.f32.gmra.mrb[0].mxu0 %v1450
        %v1791 = vpop.f32.mrb[0].mxu0
        %v1792 = vadd.f32 %v1488, %v1791
        %v1793 = vpop.f32.mrb[0].mxu0
        %1794 = vmatprep.mubr.f32.mxu0 0.0
        %1795 = vmatmul.mubr.f32.gmra.mrb[0].mxu0 %v1451
        %v1796 = vpop.f32.mrb[0].mxu0
        %v1797 = vadd.f32 %v1488, %v1796
        %v1798 = vpop.f32.mrb[0].mxu0
        %1799 = vmatprep.mubr.f32.mxu0 0.0
        %1800 = vmatmul.mubr.f32.gmra.mrb[0].mxu0 %v1452
        %v1801 = vpop.f32.mrb[0].mxu0
        %v1802 = vadd.f32 %v1488, %v1801
        %v1803 = vpop.f32.mrb[0].mxu0
        %1804 = vmatprep.mubr.f32.mxu0 0.0
        %1805 = vmatmul.mubr.f32.gmra.mrb[0].mxu0 %v1453
        %v1806 = vpop.f32.mrb[0].mxu0
        %v1807 = vadd.f32 %v1488, %v1806
        %v1808 = vpop.f32.mrb[0].mxu0
        %1809 = vmatprep.mubr.f32.mxu0 0.0
        %1810 = vmatmul.mubr.f32.gmra.mrb[0].mxu0 %v1454
        %v1811 = vpop.f32.mrb[0].mxu0
        %v1812 = vadd.f32 %v1488, %v1811
        %v1813 = vpop.f32.mrb[0].mxu0
        %1814 = vmatprep.mubr.f32.mxu0 0.0
        %1815 = vmatmul.mubr.f32.gmra.mrb[0].mxu0 %v1455
        %v1816 = vpop.f32.mrb[0].mxu0
        %v1817 = vadd.f32 %v1488, %v1816
        %v1818 = vpop.f32.mrb[0].mxu0
        %1819 = vmatprep.mubr.f32.mxu0 0.0
        %1820 = vmatmul.mubr.f32.gmra.mrb[0].mxu0 %v1456
        %v1821 = vpop.f32.mrb[0].mxu0
        %v1822 = vadd.f32 %v1488, %v1821
        %v1823 = vpop.f32.mrb[0].mxu0
        %1824 = vmatprep.mubr.f32.mxu0 0.0
        %1825 = vmatmul.mubr.f32.gmra.mrb[0].mxu0 %v1457
        %v1826 = vpop.f32.mrb[0].mxu0
        %v1827 = vadd.f32 %v1488, %v1826
        %v1828 = vpop.f32.mrb[0].mxu0
        %1829 = vmatprep.mubr.f32.mxu0 0.0
        %1830 = vmatmul.mubr.f32.gmra.mrb[0].mxu0 %v1458
        %v1831 = vpop.f32.mrb[0].mxu0
        %v1832 = vadd.f32 %v1488, %v1831
        %v1833 = vpop.f32.mrb[0].mxu0
        %1834 = vmatprep.mubr.f32.mxu0 0.0
        %1835 = vmatmul.mubr.f32.gmra.mrb[0].mxu0 %v1459
        %v1836 = vpop.f32.mrb[0].mxu0
        %v1837 = vadd.f32 %v1488, %v1836
        %v1838 = vpop.f32.mrb[0].mxu0
        %1839 = vmatprep.mubr.f32.mxu0 0.0
        %1840 = vmatmul.mubr.f32.gmra.mrb[0].mxu0 %v1460
        %v1841 = vpop.f32.mrb[0].mxu0
        %v1842 = vadd.f32 %v1488, %v1841
        %v1843 = vpop.f32.mrb[0].mxu0
        %1844 = vmatprep.mubr.f32.mxu0 0.0
        %1845 = vmatmul.mubr.f32.gmra.mrb[0].mxu0 %v1461
        %v1846 = vpop.f32.mrb[0].mxu0
        %v1847 = vadd.f32 %v1488, %v1846
        %v1848 = vpop.f32.mrb[0].mxu0
        %1849 = vmatprep.mubr.f32.mxu0 0.0
        %1850 = vmatmul.mubr.f32.gmra.mrb[0].mxu0 %v1462
        %v1851 = vpop.f32.mrb[0].mxu0
        %v1852 = vadd.f32 %v1488, %v1851
        %v1853 = vpop.f32.mrb[0].mxu0
        %1854 = vmatprep.mubr.f32.mxu0 0.0
        %1855 = vmatmul.mubr.f32.gmra.mrb[0].mxu0 %v1463
        %v1856 = vpop.f32.mrb[0].mxu0
        %v1857 = vadd.f32 %v1488, %v1856
        %v1858 = vpop.f32.mrb[0].mxu0
        %1859 = vmatprep.mubr.f32.mxu0 0.0
        %1860 = vmatmul.mubr.f32.gmra.mrb[0].mxu0 %v1464
        %v1861 = vpop.f32.mrb[0].mxu0
        %v1862 = vadd.f32 %v1488, %v1861
        %v1863 = vpop.f32.mrb[0].mxu0
        %1864 = vmatprep.mubr.f32.mxu0 0.0
        %1865 = vmatmul.mubr.f32.gmra.mrb[0].mxu0 %v1465
        %v1866 = vpop.f32.mrb[0].mxu0
        %v1867 = vadd.f32 %v1488, %v1866
        %v1868 = vpop.f32.mrb[0].mxu0
        %1869 = vmatprep.mubr.f32.mxu0 0.0
        %1870 = vmatmul.mubr.f32.gmra.mrb[0].mxu0 %v1466
        %v1871 = vpop.f32.mrb[0].mxu0
        %v1872 = vadd.f32 %v1488, %v1871
        %v1873 = vpop.f32.mrb[0].mxu0
        %1874 = vdwg.mxu0
        %1875 = vst [vmem:[%s272] sm:$0xff] %v1557
        %1876 = vst [vmem:[%s272 + $0x8] sm:$0xff] %v1562
        %1877 = vst [vmem:[%s272 + $0x10] sm:$0xff] %v1567
        %1878 = vst [vmem:[%s272 + $0x18] sm:$0xff] %v1572
        %1879 = vst [vmem:[%s272 + $0x20] sm:$0xff] %v1577
        %1880 = vst [vmem:[%s272 + $0x28] sm:$0xff] %v1582
        %1881 = vst [vmem:[%s272 + $0x30] sm:$0xff] %v1587
        %1882 = vst [vmem:[%s272 + $0x38] sm:$0xff] %v1592
        %1883 = vst [vmem:[%s272 + $0x40] sm:$0xff] %v1597
        %1884 = vst [vmem:[%s272 + $0x48] sm:$0xff] %v1602
        %1885 = vst [vmem:[%s272 + $0x50] sm:$0xff] %v1607
        %1886 = vst [vmem:[%s272 + $0x58] sm:$0xff] %v1612
        %1887 = vst [vmem:[%s272 + $0x60] sm:$0xff] %v1617
        %1888 = vst [vmem:[%s272 + $0x68] sm:$0xff] %v1622
        %1889 = vst [vmem:[%s272 + $0x70] sm:$0xff] %v1627
        %1890 = vst [vmem:[%s272 + $0x78] sm:$0xff] %v1632
        %1891 = vst [vmem:[%s272 + $0x80] sm:$0xff] %v1637
        %1892 = vst [vmem:[%s272 + $0x88] sm:$0xff] %v1642
        %1893 = vst [vmem:[%s272 + $0x90] sm:$0xff] %v1647
        %1894 = vst [vmem:[%s272 + $0x98] sm:$0xff] %v1652
        %1895 = vst [vmem:[%s272 + $0xa0] sm:$0xff] %v1657
        %1896 = vst [vmem:[%s272 + $0xa8] sm:$0xff] %v1662
        %1897 = vst [vmem:[%s272 + $0xb0] sm:$0xff] %v1667
        %1898 = vst [vmem:[%s272 + $0xb8] sm:$0xff] %v1672
        %1899 = vst [vmem:[%s272 + $0xc0] sm:$0xff] %v1677
        %1900 = vst [vmem:[%s272 + $0xc8] sm:$0xff] %v1682
        %1901 = vst [vmem:[%s272 + $0xd0] sm:$0xff] %v1687
        %1902 = vst [vmem:[%s272 + $0xd8] sm:$0xff] %v1692
        %1903 = vst [vmem:[%s272 + $0xe0] sm:$0xff] %v1697
        %1904 = vst [vmem:[%s272 + $0xe8] sm:$0xff] %v1702
        %1905 = vst [vmem:[%s272 + $0xf0] sm:$0xff] %v1707
        %1906 = vst [vmem:[%s272 + $0xf8] sm:$0xff] %v1712
        %1907 = vst [vmem:[%s272 + $0x100] sm:$0xff] %v1717
        %1908 = vst [vmem:[%s272 + $0x108] sm:$0xff] %v1722
        %1909 = vst [vmem:[%s272 + $0x110] sm:$0xff] %v1727
        %1910 = vst [vmem:[%s272 + $0x118] sm:$0xff] %v1732
        %1911 = vst [vmem:[%s272 + $0x120] sm:$0xff] %v1737
        %1912 = vst [vmem:[%s272 + $0x128] sm:$0xff] %v1742
        %1913 = vst [vmem:[%s272 + $0x130] sm:$0xff] %v1747
        %1914 = vst [vmem:[%s272 + $0x138] sm:$0xff] %v1752
        %1915 = vst [vmem:[%s272 + $0x140] sm:$0xff] %v1757
        %1916 = vst [vmem:[%s272 + $0x148] sm:$0xff] %v1762
        %1917 = vst [vmem:[%s272 + $0x150] sm:$0xff] %v1767
        %1918 = vst [vmem:[%s272 + $0x158] sm:$0xff] %v1772
        %1919 = vst [vmem:[%s272 + $0x160] sm:$0xff] %v1777
        %1920 = vst [vmem:[%s272 + $0x168] sm:$0xff] %v1782
        %1921 = vst [vmem:[%s272 + $0x170] sm:$0xff] %v1787
        %1922 = vst [vmem:[%s272 + $0x178] sm:$0xff] %v1792
        %1923 = vst [vmem:[%s272 + $0x180] sm:$0xff] %v1797
        %1924 = vst [vmem:[%s272 + $0x188] sm:$0xff] %v1802
        %1925 = vst [vmem:[%s272 + $0x190] sm:$0xff] %v1807
        %1926 = vst [vmem:[%s272 + $0x198] sm:$0xff] %v1812
        %1927 = vst [vmem:[%s272 + $0x1a0] sm:$0xff] %v1817
        %1928 = vst [vmem:[%s272 + $0x1a8] sm:$0xff] %v1822
        %1929 = vst [vmem:[%s272 + $0x1b0] sm:$0xff] %v1827
        %1930 = vst [vmem:[%s272 + $0x1b8] sm:$0xff] %v1832
        %1931 = vst [vmem:[%s272 + $0x1c0] sm:$0xff] %v1837
        %1932 = vst [vmem:[%s272 + $0x1c8] sm:$0xff] %v1842
        %1933 = vst [vmem:[%s272 + $0x1d0] sm:$0xff] %v1847
        %1934 = vst [vmem:[%s272 + $0x1d8] sm:$0xff] %v1852
        %1935 = vst [vmem:[%s272 + $0x1e0] sm:$0xff] %v1857
        %1936 = vst [vmem:[%s272 + $0x1e8] sm:$0xff] %v1862
        %1937 = vst [vmem:[%s272 + $0x1f0] sm:$0xff] %v1867
        %1938 = vst [vmem:[%s272 + $0x1f8] sm:$0xff] %v1872
        %s1939 = sand.u32 %s181, 1
        %s1940 = scalar_lea.sflag [#allocation3], %s1939
        %s1941 = sand.u32 %s181, 1
        %s1942 = smul.addr %s1941, 512
        %s1943 = scalar_lea.vmem [#allocation2], %s1942
        // Predicated region
        $region49: #{tpu_custom_call.1} parent=47 // pred_check
          %p1944 = pneg %p191
        $region50: #{tpu_custom_call.1} parent=47 // pred_check_branch
          %1946 = sbr.rel (%p1944) target = $region52
        $region51: #{tpu_custom_call.1} parent=47 // pred_region
          %s1947 = smul.u32 64, %s21
          %s1949 = ssub.s32 8192, 8192
          %1950 = vsyncadd %s1940, %s1949
          %s1951 = smul.addr %s1947, 128
          %s1952 = scalar_lea.hbm %s7, %s1951
          %s1953 = sshll.u32 %s1943, 4
          %s1954 = int_to_ptr.vmem [resolvable:$true] %s1953
          %1959 = dma.vmem_to_hbm [thread:$0]  %s1954, 8192, %s1952, %s1940, 128, 128, 8
        $region52: #{tpu_custom_call.1} parent=47 // pred_fallthru
          _
      $region48: #{tpu_custom_call.1} parent=5 // pred_fallthru
        _
      %p1960 = scmp.le.s32.totalorder 2, %s16
      // Predicated region
      $region53: #{tpu_custom_call.1} parent=5 // pred_check
        %p1961 = pneg %p1960
      $region54: #{tpu_custom_call.1} parent=5 // pred_check_branch
        %1963 = sbr.rel (%p1961) target = $region56
      $region55: #{tpu_custom_call.1} parent=5 // pred_region
        %s1964 = ssub.s32 %s16, 2
        // Predicated region
        $region57: #{tpu_custom_call.1} parent=55 // pred_check
          %p1965 = pneg %p197
        $region58: #{tpu_custom_call.1} parent=55 // pred_check_branch
          %1967 = sbr.rel (%p1965) target = $region60
        $region59: #{tpu_custom_call.1} parent=55 // pred_region
          %s1968 = sand.u32 %s182, 1
          %s1969 = scalar_lea.sflag [#allocation3], %s1968
          %s1970 = sand.u32 %s182, 1
          %s1971 = smul.addr %s1970, 512
          %s1972 = scalar_lea.vmem [#allocation2], %s1971
          %1973 = dma.done %s1969, 8192
        $region60: #{tpu_custom_call.1} parent=55 // pred_fallthru
          _
      $region56: #{tpu_custom_call.1} parent=5 // pred_fallthru
        _
    $region6: #{tpu_custom_call.1} parent=1 // loop_footer
      %s20 = sadd.s32 1, %s16
    $region7: #{tpu_custom_call.1} parent=1 // loop_footer_branch
      %15 = sbr.rel target = $region3
    $region8: #{tpu_custom_call.1} parent=1 // loop_exit
      _
    %1974 = vsyncpa [#allocation3], 1
    %s1975 = scalar_lea.sflag [#allocation3], 1
    %1976 = vsyncpa %s1975, 1

</llo_original>
